<compile_context>
chip_gen: v7x
topology: tpu7x:2x2x1
jax: 0.10.0
libtpu: 0.0.40
codegen_flags: <defaults>
</compile_context>

<pallas_src>
import functools

import jax
import jax.numpy as jnp
from jax import lax
from jax.experimental import pallas as pl
from jax.experimental.pallas import tpu as pltpu


# ------------------------------ tile pickers ---------------------------------

def _pick_aligned_tile(dim, max_tile, align):
    """Largest tile <= max_tile that divides `dim` and is a multiple of `align`;
    falls back to the full dim (full-dim blocks are always legal)."""
    if dim <= max_tile:
        return dim
    t = (max_tile // align) * align
    while t >= align:
        if dim % t == 0:
            return t
        t -= align
    return dim


def _pick_divisor(dim, max_tile):
    """Largest divisor of `dim` that is <= max_tile (no alignment needed)."""
    if dim <= max_tile:
        return dim
    for t in range(max_tile, 0, -1):
        if dim % t == 0:
            return t
    return dim


# --------------------------- dense (matmul + bias) ---------------------------
# Used for both the hoisted LSTM input projection (tiled over rows = T*B) and
# the final Linear layer (tiled over the vocab axis).

def _dense_kernel(x_ref, w_ref, b_ref, o_ref):
    o_ref[...] = (
        jnp.dot(x_ref[...], w_ref[...], preferred_element_type=jnp.float32)
        + b_ref[...]
    ).astype(o_ref.dtype)


def dense(x, w_t, b, *, max_tm=512, max_tn=1024):
    """x: (M, K); w_t: (K, N) pre-transposed; b: (N,) -> (M, N) f32."""
    M, K = x.shape
    K2, N = w_t.shape
    assert K == K2
    tm = _pick_aligned_tile(M, max_tm, 8)     # sublane-aligned row tile
    tn = _pick_aligned_tile(N, max_tn, 128)   # lane-aligned column (vocab) tile
    grid = (M // tm, N // tn)
    return pl.pallas_call(
        _dense_kernel,
        out_shape=jax.ShapeDtypeStruct((M, N), jnp.float32),
        grid_spec=pltpu.PrefetchScalarGridSpec(
            num_scalar_prefetch=0,
            grid=grid,
            in_specs=[
                pl.BlockSpec((tm, K), lambda i, j: (i, 0)),
                pl.BlockSpec((K, tn), lambda i, j: (0, j)),
                pl.BlockSpec((1, tn), lambda i, j: (0, j)),
            ],
            out_specs=pl.BlockSpec((tm, tn), lambda i, j: (i, j)),
        ),
        compiler_params=pltpu.CompilerParams(
            dimension_semantics=("parallel", "parallel")),
    )(x, w_t, b.reshape(1, N))


# ----------------------------- LSTM recurrence --------------------------------
# Inputs are the precomputed input-gate activations gx = x @ W_ih^T + (b_ih+b_hh)
# for a block of timesteps.  Only the serial part (h @ W_hh^T + gates + cell
# update) runs per timestep, with h/c carried in the resident hN/cN outputs.

def _lstm_recurrence_kernel(gx_ref, h0_ref, c0_ref, whh_ref,
                            out_ref, hN_ref, cN_ref, *, t_blk, hidden_dim):
    ti = pl.program_id(1)   # time-block index ("arbitrary" / sequential axis)

    @pl.when(ti == 0)
    def _():
        hN_ref[...] = h0_ref[...].astype(jnp.float32)
        cN_ref[...] = c0_ref[...].astype(jnp.float32)

    whh_t = whh_ref[...]    # (H, 4H), pre-transposed -> no in-kernel transpose
    H = hidden_dim

    def step(t, carry):
        h, c = carry
        gates = gx_ref[t] + jnp.dot(h, whh_t,
                                    preferred_element_type=jnp.float32)  # (b, 4H)
        i_g = jax.nn.sigmoid(gates[:, 0 * H:1 * H])
        f_g = jax.nn.sigmoid(gates[:, 1 * H:2 * H])
        g_g = jnp.tanh(gates[:, 2 * H:3 * H])
        o_g = jax.nn.sigmoid(gates[:, 3 * H:4 * H])
        c_new = f_g * c + i_g * g_g
        h_new = o_g * jnp.tanh(c_new)
        out_ref[t] = h_new.astype(out_ref.dtype)
        return h_new, c_new

    h_fin, c_fin = lax.fori_loop(
        0, t_blk, step, (hN_ref[...], cN_ref[...]), unroll=True)
    # One (b, H) writeback per time-block (not per timestep).
    hN_ref[...] = h_fin
    cN_ref[...] = c_fin


def lstm_recurrence(gx, h0, c0, w_hh_t, *, max_t_blk=32, max_b_blk=256):
    """gx: (T, B, 4H) f32 precomputed input projection (+bias).
    h0, c0: (B, H); w_hh_t: (H, 4H).
    Returns (out_seq (T, B, H), h_n (B, H), c_n (B, H))."""
    T, B, G = gx.shape
    H = w_hh_t.shape[0]
    assert G == 4 * H

    t_blk = _pick_divisor(T, max_t_blk)            # leading dim: no (8,128) rule
    b_blk = B if B <= 8 else _pick_aligned_tile(B, max_b_blk, 8)
    grid = (B // b_blk, T // t_blk)                # (parallel batch, serial time)

    kernel = functools.partial(_lstm_recurrence_kernel,
                               t_blk=t_blk, hidden_dim=H)

    out_seq, h_n, c_n = pl.pallas_call(
        kernel,
        grid_spec=pltpu.PrefetchScalarGridSpec(
            num_scalar_prefetch=0,
            grid=grid,
            in_specs=[
                pl.BlockSpec((t_blk, b_blk, 4 * H), lambda bi, ti: (ti, bi, 0)),
                pl.BlockSpec((b_blk, H), lambda bi, ti: (bi, 0)),
                pl.BlockSpec((b_blk, H), lambda bi, ti: (bi, 0)),
                pl.BlockSpec((H, 4 * H), lambda bi, ti: (0, 0)),
            ],
            out_specs=[
                pl.BlockSpec((t_blk, b_blk, H), lambda bi, ti: (ti, bi, 0)),
                pl.BlockSpec((b_blk, H), lambda bi, ti: (bi, 0)),  # resident carry
                pl.BlockSpec((b_blk, H), lambda bi, ti: (bi, 0)),  # resident carry
            ],
        ),
        out_shape=(
            jax.ShapeDtypeStruct((T, B, H), jnp.float32),
            jax.ShapeDtypeStruct((B, H), jnp.float32),
            jax.ShapeDtypeStruct((B, H), jnp.float32),
        ),
        compiler_params=pltpu.CompilerParams(
            dimension_semantics=("parallel", "arbitrary")),
    )(gx, h0, c0, w_hh_t)
    return out_seq, h_n, c_n


# ------------------------------- parameters -----------------------------------

def init_params_torch_layout(key, vocab_size, embedding_dim, hidden_dim,
                             num_layers):
    """Parameters in the PyTorch layout (W_ih (4H,in), W_hh (4H,H), fc (V,H))."""
    params = {}
    key, k_emb = jax.random.split(key)
    params["embedding"] = jax.random.normal(
        k_emb, (vocab_size, embedding_dim), jnp.float32) * 0.1

    scale = 1.0 / jnp.sqrt(hidden_dim)
    layers = []
    for layer in range(num_layers):
        in_dim = embedding_dim if layer == 0 else hidden_dim
        key, k1, k2, k3, k4 = jax.random.split(key, 5)
        layers.append(dict(
            w_ih=jax.random.uniform(k1, (4 * hidden_dim, in_dim), jnp.float32,
                                    -scale, scale),
            w_hh=jax.random.uniform(k2, (4 * hidden_dim, hidden_dim), jnp.float32,
                                    -scale, scale),
            b_ih=jax.random.uniform(k3, (4 * hidden_dim,), jnp.float32,
                                    -scale, scale),
            b_hh=jax.random.uniform(k4, (4 * hidden_dim,), jnp.float32,
                                    -scale, scale),
        ))
    params["lstm"] = layers

    key, k_w, k_b = jax.random.split(key, 3)
    params["fc_w"] = jax.random.uniform(
        k_w, (vocab_size, hidden_dim), jnp.float32, -scale, scale)
    params["fc_b"] = jax.random.uniform(
        k_b, (vocab_size,), jnp.float32, -scale, scale)
    return params


def prepare_kernel_params(raw):
    """One-time: pre-transpose weights (lane-major for the MXU) and fold biases."""
    prepared = {"embedding": raw["embedding"],
                "fc_w_t": raw["fc_w"].T,          # (H, V)
                "fc_b": raw["fc_b"]}
    prepared["lstm"] = [
        dict(w_ih_t=lp["w_ih"].T,                 # (in_dim, 4H)
             w_hh_t=lp["w_hh"].T,                 # (H, 4H)
             bias=lp["b_ih"] + lp["b_hh"])        # (4H,)
        for lp in raw["lstm"]
    ]
    return prepared


# ------------------------------- full model -----------------------------------

@jax.jit
def lstm_model_forward(params, x_ids, hidden):
    """Equivalent of LSTMModel.forward(x, hidden).

    params: output of prepare_kernel_params.
    x_ids: (B, T) int32 token ids
    hidden: (h0, c0), each (num_layers, B, H)
    Returns (logits (B, V), (h_n, c_n)).
    """
    h0_all, c0_all = hidden
    B, T = x_ids.shape

    # Embedding gather (plain JAX glue), built time-major directly: (T, B, E).
    x_tbe = jnp.take(params["embedding"], x_ids.T, axis=0).astype(jnp.float32)

    layer_in = x_tbe
    h_finals, c_finals = [], []
    for layer_idx, lp in enumerate(params["lstm"]):
        in_dim = layer_in.shape[-1]
        H = lp["w_hh_t"].shape[0]
        # Hoisted input projection for all timesteps at once (no serial dep).
        gx = dense(layer_in.reshape(T * B, in_dim), lp["w_ih_t"], lp["bias"])
        gx = gx.reshape(T, B, 4 * H)
        # Serial part only: h @ W_hh + gate math, blocked over timesteps.
        out_seq, h_n, c_n = lstm_recurrence(
            gx, h0_all[layer_idx], c0_all[layer_idx], lp["w_hh_t"])
        h_finals.append(h_n)
        c_finals.append(c_n)
        layer_in = out_seq

    h_n_all = jnp.stack(h_finals, axis=0)
    c_n_all = jnp.stack(c_finals, axis=0)

    # out[:, -1, :] (batch_first) == last timestep of top layer (time-major [-1]).
    h_last = layer_in[-1]                                          # (B, H)
    logits = dense(h_last, params["fc_w_t"], params["fc_b"])       # (B, V), V-tiled
    return logits, (h_n_all, c_n_all)


def init_hidden(num_layers, batch_size, hidden_dim):
    z = jnp.zeros((num_layers, batch_size, hidden_dim), jnp.float32)
    return (z, z)


# --------------------------------- reference -----------------------------------

def lstm_model_forward_ref(raw_params, x_ids, hidden):
    """Pure-JAX reference in the PyTorch layout, for sanity checking."""
    h0_all, c0_all = hidden
    x = jnp.take(raw_params["embedding"], x_ids, axis=0)  # (B, T, E)
    layer_in = x
    h_fin, c_fin = [], []
    for layer_idx, lp in enumerate(raw_params["lstm"]):
        H = lp["w_hh"].shape[1]
        h = h0_all[layer_idx]
        c = c0_all[layer_idx]
        outs = []
        for t in range(layer_in.shape[1]):
            xt = layer_in[:, t, :]
            g = xt @ lp["w_ih"].T + h @ lp["w_hh"].T + lp["b_ih"] + lp["b_hh"]
            i = jax.nn.sigmoid(g[:, 0:H])
            f = jax.nn.sigmoid(g[:, H:2 * H])
            gg = jnp.tanh(g[:, 2 * H:3 * H])
            o = jax.nn.sigmoid(g[:, 3 * H:4 * H])
            c = f * c + i * gg
            h = o * jnp.tanh(c)
            outs.append(h)
        layer_in = jnp.stack(outs, axis=1)
        h_fin.append(h)
        c_fin.append(c)
    logits = layer_in[:, -1, :] @ raw_params["fc_w"].T + raw_params["fc_b"]
    return logits, (jnp.stack(h_fin, 0), jnp.stack(c_fin, 0))


# ----------------------------------- main ---------------------------------------

if __name__ == "__main__":
    vocab_size = 32
    embedding_dim = 16
    hidden_dim = 32
    num_layers = 2
    batch = 2
    seq_len = 8

    key = jax.random.PRNGKey(0)
    key, k_params, k_ids = jax.random.split(key, 3)
    raw_params = init_params_torch_layout(
        k_params, vocab_size, embedding_dim, hidden_dim, num_layers)
    params = prepare_kernel_params(raw_params)

    x_ids = jax.random.randint(k_ids, (batch, seq_len), 0, vocab_size, jnp.int32)
    hidden = init_hidden(num_layers, batch, hidden_dim)

    logits, (h_n, c_n) = lstm_model_forward(params, x_ids, hidden)
    jax.block_until_ready((logits, h_n, c_n))

    ref_logits, (ref_h, ref_c) = lstm_model_forward_ref(raw_params, x_ids, hidden)
    assert logits.shape == (batch, vocab_size)
    assert h_n.shape == (num_layers, batch, hidden_dim)
    assert c_n.shape == (num_layers, batch, hidden_dim)
    assert jnp.allclose(logits, ref_logits, atol=1e-4), "logits mismatch"
    assert jnp.allclose(h_n, ref_h, atol=1e-4), "h_n mismatch"
    assert jnp.allclose(c_n, ref_c, atol=1e-4), "c_n mismatch"

    print("KERNEL_OK")
</pallas_src>

<mosaic_0001>
module attributes {stable_mosaic.version = 11 : i64} {
  func.func @_dense_kernel(%arg0: i32, %arg1: i32, %arg2: memref<16x32xf32, #tpu.memory_space<vmem>>, %arg3: memref<32x128xf32, #tpu.memory_space<vmem>>, %arg4: memref<1x128xf32, #tpu.memory_space<vmem>>, %arg5: memref<16x128xf32, #tpu.memory_space<vmem>>) attributes {dimension_semantics = [#tpu.dimension_semantics<parallel>, #tpu.dimension_semantics<parallel>], iteration_bounds = array<i64: 1, 1>, scalar_prefetch = 0 : i64, scratch_operands = 0 : i64, tpu.core_type = #tpu.core_type<tc>, window_params = [{transform_indices = @transform_0, window_bounds = array<i64: 16, 32>}, {transform_indices = @transform_1, window_bounds = array<i64: 32, 128>}, {transform_indices = @transform_2, window_bounds = array<i64: 1, 128>}, {transform_indices = @transform_3, window_bounds = array<i64: 16, 128>}]} {
    %c0 = arith.constant 0 : index
    %c0_0 = arith.constant 0 : index
    %0 = vector.load %arg2[%c0, %c0_0] : memref<16x32xf32, #tpu.memory_space<vmem>>, vector<16x32xf32>
    %c0_1 = arith.constant 0 : index
    %c0_2 = arith.constant 0 : index
    %1 = vector.load %arg3[%c0_1, %c0_2] : memref<32x128xf32, #tpu.memory_space<vmem>>, vector<32x128xf32>
    %cst = arith.constant dense<0.000000e+00> : vector<16x128xf32>
    %2 = tpu.matmul %0, %1, %cst {dimension_numbers = #tpu.dot_dimension_numbers<[1], [0], [0], [1], [0, 0, 1, 1], [], []>} : vector<16x32xf32>, vector<32x128xf32>, vector<16x128xf32> -> vector<16x128xf32>
    %c0_3 = arith.constant 0 : index
    %c0_4 = arith.constant 0 : index
    %3 = vector.load %arg4[%c0_3, %c0_4] : memref<1x128xf32, #tpu.memory_space<vmem>>, vector<1x128xf32>
    %4 = vector.broadcast %3 : vector<1x128xf32> to vector<16x128xf32>
    %5 = arith.addf %2, %4 : vector<16x128xf32>
    %c0_5 = arith.constant 0 : index
    %c0_6 = arith.constant 0 : index
    %6 = vector.load %arg5[%c0_5, %c0_6] : memref<16x128xf32, #tpu.memory_space<vmem>>, vector<16x128xf32>
    tpu.vector_store %arg5[%c0_5, %c0_6], %5 {strides = array<i32>} : memref<16x128xf32, #tpu.memory_space<vmem>>, vector<16x128xf32>,
    return
  }
  func.func @transform_0(%arg0: i32, %arg1: i32) -> (i32, i32) {
    %c0_i32 = arith.constant 0 : i32
    %c0_i32_0 = arith.constant 0 : i32
    return %arg0, %c0_i32 : i32, i32
  }
  func.func @transform_1(%arg0: i32, %arg1: i32) -> (i32, i32) {
    %c0_i32 = arith.constant 0 : i32
    %c0_i32_0 = arith.constant 0 : i32
    return %c0_i32, %arg1 : i32, i32
  }
  func.func @transform_2(%arg0: i32, %arg1: i32) -> (i32, i32) {
    %c0_i32 = arith.constant 0 : i32
    %c0_i32_0 = arith.constant 0 : i32
    return %c0_i32, %arg1 : i32, i32
  }
  func.func @transform_3(%arg0: i32, %arg1: i32) -> (i32, i32) {
    %c0_i32 = arith.constant 0 : i32
    return %arg0, %arg1 : i32, i32
  }
}

module attributes {stable_mosaic.version = 11 : i64} {
  func.func @_dense_kernel(%arg0: i32, %arg1: i32, %arg2: memref<2x32xf32, #tpu.memory_space<vmem>>, %arg3: memref<32x32xf32, #tpu.memory_space<vmem>>, %arg4: memref<1x32xf32, #tpu.memory_space<vmem>>, %arg5: memref<2x32xf32, #tpu.memory_space<vmem>>) attributes {dimension_semantics = [#tpu.dimension_semantics<parallel>, #tpu.dimension_semantics<parallel>], iteration_bounds = array<i64: 1, 1>, scalar_prefetch = 0 : i64, scratch_operands = 0 : i64, tpu.core_type = #tpu.core_type<tc>, window_params = [{transform_indices = @transform_0, window_bounds = array<i64: 2, 32>}, {transform_indices = @transform_1, window_bounds = array<i64: 32, 32>}, {transform_indices = @transform_2, window_bounds = array<i64: 1, 32>}, {transform_indices = @transform_3, window_bounds = array<i64: 2, 32>}]} {
    %c0 = arith.constant 0 : index
    %c0_0 = arith.constant 0 : index
    %0 = vector.load %arg2[%c0, %c0_0] : memref<2x32xf32, #tpu.memory_space<vmem>>, vector<2x32xf32>
    %c0_1 = arith.constant 0 : index
    %c0_2 = arith.constant 0 : index
    %1 = vector.load %arg3[%c0_1, %c0_2] : memref<32x32xf32, #tpu.memory_space<vmem>>, vector<32x32xf32>
    %cst = arith.constant dense<0.000000e+00> : vector<2x32xf32>
    %2 = tpu.matmul %0, %1, %cst {dimension_numbers = #tpu.dot_dimension_numbers<[1], [0], [0], [1], [0, 0, 1, 1], [], []>} : vector<2x32xf32>, vector<32x32xf32>, vector<2x32xf32> -> vector<2x32xf32>
    %c0_3 = arith.constant 0 : index
    %c0_4 = arith.constant 0 : index
    %3 = vector.load %arg4[%c0_3, %c0_4] : memref<1x32xf32, #tpu.memory_space<vmem>>, vector<1x32xf32>
    %4 = vector.broadcast %3 : vector<1x32xf32> to vector<2x32xf32>
    %5 = arith.addf %2, %4 : vector<2x32xf32>
    %c0_5 = arith.constant 0 : index
    %c0_6 = arith.constant 0 : index
    %6 = vector.load %arg5[%c0_5, %c0_6] : memref<2x32xf32, #tpu.memory_space<vmem>>, vector<2x32xf32>
    tpu.vector_store %arg5[%c0_5, %c0_6], %5 {strides = array<i32>} : memref<2x32xf32, #tpu.memory_space<vmem>>, vector<2x32xf32>,
    return
  }
  func.func @transform_0(%arg0: i32, %arg1: i32) -> (i32, i32) {
    %c0_i32 = arith.constant 0 : i32
    %c0_i32_0 = arith.constant 0 : i32
    return %arg0, %c0_i32 : i32, i32
  }
  func.func @transform_1(%arg0: i32, %arg1: i32) -> (i32, i32) {
    %c0_i32 = arith.constant 0 : i32
    %c0_i32_0 = arith.constant 0 : i32
    return %c0_i32, %arg1 : i32, i32
  }
  func.func @transform_2(%arg0: i32, %arg1: i32) -> (i32, i32) {
    %c0_i32 = arith.constant 0 : i32
    %c0_i32_0 = arith.constant 0 : i32
    return %c0_i32, %arg1 : i32, i32
  }
  func.func @transform_3(%arg0: i32, %arg1: i32) -> (i32, i32) {
    %c0_i32 = arith.constant 0 : i32
    return %arg0, %arg1 : i32, i32
  }
}

module attributes {stable_mosaic.version = 11 : i64} {
  func.func @_dense_kernel(%arg0: i32, %arg1: i32, %arg2: memref<16x16xf32, #tpu.memory_space<vmem>>, %arg3: memref<16x128xf32, #tpu.memory_space<vmem>>, %arg4: memref<1x128xf32, #tpu.memory_space<vmem>>, %arg5: memref<16x128xf32, #tpu.memory_space<vmem>>) attributes {dimension_semantics = [#tpu.dimension_semantics<parallel>, #tpu.dimension_semantics<parallel>], iteration_bounds = array<i64: 1, 1>, scalar_prefetch = 0 : i64, scratch_operands = 0 : i64, tpu.core_type = #tpu.core_type<tc>, window_params = [{transform_indices = @transform_0, window_bounds = array<i64: 16, 16>}, {transform_indices = @transform_1, window_bounds = array<i64: 16, 128>}, {transform_indices = @transform_2, window_bounds = array<i64: 1, 128>}, {transform_indices = @transform_3, window_bounds = array<i64: 16, 128>}]} {
    %c0 = arith.constant 0 : index
    %c0_0 = arith.constant 0 : index
    %0 = vector.load %arg2[%c0, %c0_0] : memref<16x16xf32, #tpu.memory_space<vmem>>, vector<16x16xf32>
    %c0_1 = arith.constant 0 : index
    %c0_2 = arith.constant 0 : index
    %1 = vector.load %arg3[%c0_1, %c0_2] : memref<16x128xf32, #tpu.memory_space<vmem>>, vector<16x128xf32>
    %cst = arith.constant dense<0.000000e+00> : vector<16x128xf32>
    %2 = tpu.matmul %0, %1, %cst {dimension_numbers = #tpu.dot_dimension_numbers<[1], [0], [0], [1], [0, 0, 1, 1], [], []>} : vector<16x16xf32>, vector<16x128xf32>, vector<16x128xf32> -> vector<16x128xf32>
    %c0_3 = arith.constant 0 : index
    %c0_4 = arith.constant 0 : index
    %3 = vector.load %arg4[%c0_3, %c0_4] : memref<1x128xf32, #tpu.memory_space<vmem>>, vector<1x128xf32>
    %4 = vector.broadcast %3 : vector<1x128xf32> to vector<16x128xf32>
    %5 = arith.addf %2, %4 : vector<16x128xf32>
    %c0_5 = arith.constant 0 : index
    %c0_6 = arith.constant 0 : index
    %6 = vector.load %arg5[%c0_5, %c0_6] : memref<16x128xf32, #tpu.memory_space<vmem>>, vector<16x128xf32>
    tpu.vector_store %arg5[%c0_5, %c0_6], %5 {strides = array<i32>} : memref<16x128xf32, #tpu.memory_space<vmem>>, vector<16x128xf32>,
    return
  }
  func.func @transform_0(%arg0: i32, %arg1: i32) -> (i32, i32) {
    %c0_i32 = arith.constant 0 : i32
    %c0_i32_0 = arith.constant 0 : i32
    return %arg0, %c0_i32 : i32, i32
  }
  func.func @transform_1(%arg0: i32, %arg1: i32) -> (i32, i32) {
    %c0_i32 = arith.constant 0 : i32
    %c0_i32_0 = arith.constant 0 : i32
    return %c0_i32, %arg1 : i32, i32
  }
  func.func @transform_2(%arg0: i32, %arg1: i32) -> (i32, i32) {
    %c0_i32 = arith.constant 0 : i32
    %c0_i32_0 = arith.constant 0 : i32
    return %c0_i32, %arg1 : i32, i32
  }
  func.func @transform_3(%arg0: i32, %arg1: i32) -> (i32, i32) {
    %c0_i32 = arith.constant 0 : i32
    return %arg0, %arg1 : i32, i32
  }
}

module attributes {stable_mosaic.version = 11 : i64} {
  func.func @_lstm_recurrence_kernel(%arg0: i32, %arg1: i32, %arg2: memref<8x2x128xf32, #tpu.memory_space<vmem>>, %arg3: memref<2x32xf32, #tpu.memory_space<vmem>>, %arg4: memref<2x32xf32, #tpu.memory_space<vmem>>, %arg5: memref<32x128xf32, #tpu.memory_space<vmem>>, %arg6: memref<8x2x32xf32, #tpu.memory_space<vmem>>, %arg7: memref<2x32xf32, #tpu.memory_space<vmem>>, %arg8: memref<2x32xf32, #tpu.memory_space<vmem>>) attributes {dimension_semantics = [#tpu.dimension_semantics<parallel>, #tpu.dimension_semantics<arbitrary>], iteration_bounds = array<i64: 1, 1>, scalar_prefetch = 0 : i64, scratch_operands = 0 : i64, tpu.core_type = #tpu.core_type<tc>, window_params = [{transform_indices = @transform_0, window_bounds = array<i64: 8, 2, 128>}, {transform_indices = @transform_1, window_bounds = array<i64: 2, 32>}, {transform_indices = @transform_2, window_bounds = array<i64: 2, 32>}, {pipeline_mode = #tpu.pipeline_mode<synchronous>, transform_indices = @transform_3, window_bounds = array<i64: 32, 128>}, {transform_indices = @transform_4, window_bounds = array<i64: 8, 2, 32>}, {transform_indices = @transform_5, window_bounds = array<i64: 2, 32>}, {transform_indices = @transform_6, window_bounds = array<i64: 2, 32>}]} {
    %c0_i32 = arith.constant 0 : i32
    %0 = arith.cmpi eq, %arg1, %c0_i32 : i32
    %1 = arith.extui %0 : i1 to i32
    %c0_i32_0 = arith.constant 0 : i32
    %2 = arith.cmpi ne, %1, %c0_i32_0 : i32
    scf.if %2 {
      %c0_74 = arith.constant 0 : index
      %c0_75 = arith.constant 0 : index
      %280 = vector.load %arg3[%c0_74, %c0_75] : memref<2x32xf32, #tpu.memory_space<vmem>>, vector<2x32xf32>
      %c0_76 = arith.constant 0 : index
      %c0_77 = arith.constant 0 : index
      %281 = vector.load %arg7[%c0_76, %c0_77] : memref<2x32xf32, #tpu.memory_space<vmem>>, vector<2x32xf32>
      tpu.vector_store %arg7[%c0_76, %c0_77], %280 {strides = array<i32>} : memref<2x32xf32, #tpu.memory_space<vmem>>, vector<2x32xf32>,
      %c0_78 = arith.constant 0 : index
      %c0_79 = arith.constant 0 : index
      %282 = vector.load %arg4[%c0_78, %c0_79] : memref<2x32xf32, #tpu.memory_space<vmem>>, vector<2x32xf32>
      %c0_80 = arith.constant 0 : index
      %c0_81 = arith.constant 0 : index
      %283 = vector.load %arg8[%c0_80, %c0_81] : memref<2x32xf32, #tpu.memory_space<vmem>>, vector<2x32xf32>
      tpu.vector_store %arg8[%c0_80, %c0_81], %282 {strides = array<i32>} : memref<2x32xf32, #tpu.memory_space<vmem>>, vector<2x32xf32>,
    } else {
    }
    %c0 = arith.constant 0 : index
    %c0_1 = arith.constant 0 : index
    %3 = vector.load %arg5[%c0, %c0_1] : memref<32x128xf32, #tpu.memory_space<vmem>>, vector<32x128xf32>
    %c0_2 = arith.constant 0 : index
    %c0_3 = arith.constant 0 : index
    %4 = vector.load %arg7[%c0_2, %c0_3] : memref<2x32xf32, #tpu.memory_space<vmem>>, vector<2x32xf32>
    %c0_4 = arith.constant 0 : index
    %c0_5 = arith.constant 0 : index
    %5 = vector.load %arg8[%c0_4, %c0_5] : memref<2x32xf32, #tpu.memory_space<vmem>>, vector<2x32xf32>
    %c0_i32_6 = arith.constant 0 : i32
    %6 = arith.index_cast %c0_i32_6 : i32 to index
    %c0_7 = arith.constant 0 : index
    %c0_8 = arith.constant 0 : index
    %7 = vector.load %arg2[%6, %c0_7, %c0_8] : memref<8x2x128xf32, #tpu.memory_space<vmem>>, vector<1x2x128xf32>
    %8 = vector.shape_cast %7 : vector<1x2x128xf32> to vector<2x128xf32>
    %cst = arith.constant dense<0.000000e+00> : vector<2x128xf32>
    %9 = tpu.matmul %4, %3, %cst {dimension_numbers = #tpu.dot_dimension_numbers<[1], [0], [0], [1], [0, 0, 1, 1], [], []>} : vector<2x32xf32>, vector<32x128xf32>, vector<2x128xf32> -> vector<2x128xf32>
    %10 = arith.addf %8, %9 : vector<2x128xf32>
    %11 = vector.extract_strided_slice %10 {offsets = [0, 0], sizes = [2, 32], strides = [1, 1]} : vector<2x128xf32> to vector<2x32xf32>
    %12 = arith.negf %11 : vector<2x32xf32>
    %13 = math.exp %12 : vector<2x32xf32>
    %cst_9 = arith.constant 1.000000e+00 : f32
    %14 = vector.broadcast %cst_9 : f32 to vector<2x32xf32>
    %15 = arith.addf %14, %13 : vector<2x32xf32>
    %16 = arith.divf %14, %15 : vector<2x32xf32>
    %17 = vector.extract_strided_slice %10 {offsets = [0, 32], sizes = [2, 32], strides = [1, 1]} : vector<2x128xf32> to vector<2x32xf32>
    %18 = arith.negf %17 : vector<2x32xf32>
    %19 = math.exp %18 : vector<2x32xf32>
    %cst_10 = arith.constant 1.000000e+00 : f32
    %20 = vector.broadcast %cst_10 : f32 to vector<2x32xf32>
    %21 = arith.addf %20, %19 : vector<2x32xf32>
    %22 = arith.divf %20, %21 : vector<2x32xf32>
    %23 = vector.extract_strided_slice %10 {offsets = [0, 64], sizes = [2, 32], strides = [1, 1]} : vector<2x128xf32> to vector<2x32xf32>
    %24 = math.tanh %23 : vector<2x32xf32>
    %25 = vector.extract_strided_slice %10 {offsets = [0, 96], sizes = [2, 32], strides = [1, 1]} : vector<2x128xf32> to vector<2x32xf32>
    %26 = arith.negf %25 : vector<2x32xf32>
    %27 = math.exp %26 : vector<2x32xf32>
    %cst_11 = arith.constant 1.000000e+00 : f32
    %28 = vector.broadcast %cst_11 : f32 to vector<2x32xf32>
    %29 = arith.addf %28, %27 : vector<2x32xf32>
    %30 = arith.divf %28, %29 : vector<2x32xf32>
    %31 = arith.mulf %22, %5 : vector<2x32xf32>
    %32 = arith.mulf %16, %24 : vector<2x32xf32>
    %33 = arith.addf %31, %32 : vector<2x32xf32>
    %34 = math.tanh %33 : vector<2x32xf32>
    %35 = arith.mulf %30, %34 : vector<2x32xf32>
    %36 = arith.index_cast %c0_i32_6 : i32 to index
    %c0_12 = arith.constant 0 : index
    %c0_13 = arith.constant 0 : index
    %37 = vector.load %arg6[%36, %c0_12, %c0_13] : memref<8x2x32xf32, #tpu.memory_space<vmem>>, vector<1x2x32xf32>
    %38 = vector.shape_cast %37 : vector<1x2x32xf32> to vector<2x32xf32>
    %39 = vector.shape_cast %35 : vector<2x32xf32> to vector<1x2x32xf32>
    tpu.vector_store %arg6[%36, %c0_12, %c0_13], %39 {strides = array<i32>} : memref<8x2x32xf32, #tpu.memory_space<vmem>>, vector<1x2x32xf32>,
    %c1_i32 = arith.constant 1 : i32
    %40 = arith.index_cast %c1_i32 : i32 to index
    %c0_14 = arith.constant 0 : index
    %c0_15 = arith.constant 0 : index
    %41 = vector.load %arg2[%40, %c0_14, %c0_15] : memref<8x2x128xf32, #tpu.memory_space<vmem>>, vector<1x2x128xf32>
    %42 = vector.shape_cast %41 : vector<1x2x128xf32> to vector<2x128xf32>
    %cst_16 = arith.constant dense<0.000000e+00> : vector<2x128xf32>
    %43 = tpu.matmul %35, %3, %cst_16 {dimension_numbers = #tpu.dot_dimension_numbers<[1], [0], [0], [1], [0, 0, 1, 1], [], []>} : vector<2x32xf32>, vector<32x128xf32>, vector<2x128xf32> -> vector<2x128xf32>
    %44 = arith.addf %42, %43 : vector<2x128xf32>
    %45 = vector.extract_strided_slice %44 {offsets = [0, 0], sizes = [2, 32], strides = [1, 1]} : vector<2x128xf32> to vector<2x32xf32>
    %46 = arith.negf %45 : vector<2x32xf32>
    %47 = math.exp %46 : vector<2x32xf32>
    %cst_17 = arith.constant 1.000000e+00 : f32
    %48 = vector.broadcast %cst_17 : f32 to vector<2x32xf32>
    %49 = arith.addf %48, %47 : vector<2x32xf32>
    %50 = arith.divf %48, %49 : vector<2x32xf32>
    %51 = vector.extract_strided_slice %44 {offsets = [0, 32], sizes = [2, 32], strides = [1, 1]} : vector<2x128xf32> to vector<2x32xf32>
    %52 = arith.negf %51 : vector<2x32xf32>
    %53 = math.exp %52 : vector<2x32xf32>
    %cst_18 = arith.constant 1.000000e+00 : f32
    %54 = vector.broadcast %cst_18 : f32 to vector<2x32xf32>
    %55 = arith.addf %54, %53 : vector<2x32xf32>
    %56 = arith.divf %54, %55 : vector<2x32xf32>
    %57 = vector.extract_strided_slice %44 {offsets = [0, 64], sizes = [2, 32], strides = [1, 1]} : vector<2x128xf32> to vector<2x32xf32>
    %58 = math.tanh %57 : vector<2x32xf32>
    %59 = vector.extract_strided_slice %44 {offsets = [0, 96], sizes = [2, 32], strides = [1, 1]} : vector<2x128xf32> to vector<2x32xf32>
    %60 = arith.negf %59 : vector<2x32xf32>
    %61 = math.exp %60 : vector<2x32xf32>
    %cst_19 = arith.constant 1.000000e+00 : f32
    %62 = vector.broadcast %cst_19 : f32 to vector<2x32xf32>
    %63 = arith.addf %62, %61 : vector<2x32xf32>
    %64 = arith.divf %62, %63 : vector<2x32xf32>
    %65 = arith.mulf %56, %33 : vector<2x32xf32>
    %66 = arith.mulf %50, %58 : vector<2x32xf32>
    %67 = arith.addf %65, %66 : vector<2x32xf32>
    %68 = math.tanh %67 : vector<2x32xf32>
    %69 = arith.mulf %64, %68 : vector<2x32xf32>
    %70 = arith.index_cast %c1_i32 : i32 to index
    %c0_20 = arith.constant 0 : index
    %c0_21 = arith.constant 0 : index
    %71 = vector.load %arg6[%70, %c0_20, %c0_21] : memref<8x2x32xf32, #tpu.memory_space<vmem>>, vector<1x2x32xf32>
    %72 = vector.shape_cast %71 : vector<1x2x32xf32> to vector<2x32xf32>
    %73 = vector.shape_cast %69 : vector<2x32xf32> to vector<1x2x32xf32>
    tpu.vector_store %arg6[%70, %c0_20, %c0_21], %73 {strides = array<i32>} : memref<8x2x32xf32, #tpu.memory_space<vmem>>, vector<1x2x32xf32>,
    %c2_i32 = arith.constant 2 : i32
    %74 = arith.index_cast %c2_i32 : i32 to index
    %c0_22 = arith.constant 0 : index
    %c0_23 = arith.constant 0 : index
    %75 = vector.load %arg2[%74, %c0_22, %c0_23] : memref<8x2x128xf32, #tpu.memory_space<vmem>>, vector<1x2x128xf32>
    %76 = vector.shape_cast %75 : vector<1x2x128xf32> to vector<2x128xf32>
    %cst_24 = arith.constant dense<0.000000e+00> : vector<2x128xf32>
    %77 = tpu.matmul %69, %3, %cst_24 {dimension_numbers = #tpu.dot_dimension_numbers<[1], [0], [0], [1], [0, 0, 1, 1], [], []>} : vector<2x32xf32>, vector<32x128xf32>, vector<2x128xf32> -> vector<2x128xf32>
    %78 = arith.addf %76, %77 : vector<2x128xf32>
    %79 = vector.extract_strided_slice %78 {offsets = [0, 0], sizes = [2, 32], strides = [1, 1]} : vector<2x128xf32> to vector<2x32xf32>
    %80 = arith.negf %79 : vector<2x32xf32>
    %81 = math.exp %80 : vector<2x32xf32>
    %cst_25 = arith.constant 1.000000e+00 : f32
    %82 = vector.broadcast %cst_25 : f32 to vector<2x32xf32>
    %83 = arith.addf %82, %81 : vector<2x32xf32>
    %84 = arith.divf %82, %83 : vector<2x32xf32>
    %85 = vector.extract_strided_slice %78 {offsets = [0, 32], sizes = [2, 32], strides = [1, 1]} : vector<2x128xf32> to vector<2x32xf32>
    %86 = arith.negf %85 : vector<2x32xf32>
    %87 = math.exp %86 : vector<2x32xf32>
    %cst_26 = arith.constant 1.000000e+00 : f32
    %88 = vector.broadcast %cst_26 : f32 to vector<2x32xf32>
    %89 = arith.addf %88, %87 : vector<2x32xf32>
    %90 = arith.divf %88, %89 : vector<2x32xf32>
    %91 = vector.extract_strided_slice %78 {offsets = [0, 64], sizes = [2, 32], strides = [1, 1]} : vector<2x128xf32> to vector<2x32xf32>
    %92 = math.tanh %91 : vector<2x32xf32>
    %93 = vector.extract_strided_slice %78 {offsets = [0, 96], sizes = [2, 32], strides = [1, 1]} : vector<2x128xf32> to vector<2x32xf32>
    %94 = arith.negf %93 : vector<2x32xf32>
    %95 = math.exp %94 : vector<2x32xf32>
    %cst_27 = arith.constant 1.000000e+00 : f32
    %96 = vector.broadcast %cst_27 : f32 to vector<2x32xf32>
    %97 = arith.addf %96, %95 : vector<2x32xf32>
    %98 = arith.divf %96, %97 : vector<2x32xf32>
    %99 = arith.mulf %90, %67 : vector<2x32xf32>
    %100 = arith.mulf %84, %92 : vector<2x32xf32>
    %101 = arith.addf %99, %100 : vector<2x32xf32>
    %102 = math.tanh %101 : vector<2x32xf32>
    %103 = arith.mulf %98, %102 : vector<2x32xf32>
    %104 = arith.index_cast %c2_i32 : i32 to index
    %c0_28 = arith.constant 0 : index
    %c0_29 = arith.constant 0 : index
    %105 = vector.load %arg6[%104, %c0_28, %c0_29] : memref<8x2x32xf32, #tpu.memory_space<vmem>>, vector<1x2x32xf32>
    %106 = vector.shape_cast %105 : vector<1x2x32xf32> to vector<2x32xf32>
    %107 = vector.shape_cast %103 : vector<2x32xf32> to vector<1x2x32xf32>
    tpu.vector_store %arg6[%104, %c0_28, %c0_29], %107 {strides = array<i32>} : memref<8x2x32xf32, #tpu.memory_space<vmem>>, vector<1x2x32xf32>,
    %c3_i32 = arith.constant 3 : i32
    %108 = arith.index_cast %c3_i32 : i32 to index
    %c0_30 = arith.constant 0 : index
    %c0_31 = arith.constant 0 : index
    %109 = vector.load %arg2[%108, %c0_30, %c0_31] : memref<8x2x128xf32, #tpu.memory_space<vmem>>, vector<1x2x128xf32>
    %110 = vector.shape_cast %109 : vector<1x2x128xf32> to vector<2x128xf32>
    %cst_32 = arith.constant dense<0.000000e+00> : vector<2x128xf32>
    %111 = tpu.matmul %103, %3, %cst_32 {dimension_numbers = #tpu.dot_dimension_numbers<[1], [0], [0], [1], [0, 0, 1, 1], [], []>} : vector<2x32xf32>, vector<32x128xf32>, vector<2x128xf32> -> vector<2x128xf32>
    %112 = arith.addf %110, %111 : vector<2x128xf32>
    %113 = vector.extract_strided_slice %112 {offsets = [0, 0], sizes = [2, 32], strides = [1, 1]} : vector<2x128xf32> to vector<2x32xf32>
    %114 = arith.negf %113 : vector<2x32xf32>
    %115 = math.exp %114 : vector<2x32xf32>
    %cst_33 = arith.constant 1.000000e+00 : f32
    %116 = vector.broadcast %cst_33 : f32 to vector<2x32xf32>
    %117 = arith.addf %116, %115 : vector<2x32xf32>
    %118 = arith.divf %116, %117 : vector<2x32xf32>
    %119 = vector.extract_strided_slice %112 {offsets = [0, 32], sizes = [2, 32], strides = [1, 1]} : vector<2x128xf32> to vector<2x32xf32>
    %120 = arith.negf %119 : vector<2x32xf32>
    %121 = math.exp %120 : vector<2x32xf32>
    %cst_34 = arith.constant 1.000000e+00 : f32
    %122 = vector.broadcast %cst_34 : f32 to vector<2x32xf32>
    %123 = arith.addf %122, %121 : vector<2x32xf32>
    %124 = arith.divf %122, %123 : vector<2x32xf32>
    %125 = vector.extract_strided_slice %112 {offsets = [0, 64], sizes = [2, 32], strides = [1, 1]} : vector<2x128xf32> to vector<2x32xf32>
    %126 = math.tanh %125 : vector<2x32xf32>
    %127 = vector.extract_strided_slice %112 {offsets = [0, 96], sizes = [2, 32], strides = [1, 1]} : vector<2x128xf32> to vector<2x32xf32>
    %128 = arith.negf %127 : vector<2x32xf32>
    %129 = math.exp %128 : vector<2x32xf32>
    %cst_35 = arith.constant 1.000000e+00 : f32
    %130 = vector.broadcast %cst_35 : f32 to vector<2x32xf32>
    %131 = arith.addf %130, %129 : vector<2x32xf32>
    %132 = arith.divf %130, %131 : vector<2x32xf32>
    %133 = arith.mulf %124, %101 : vector<2x32xf32>
    %134 = arith.mulf %118, %126 : vector<2x32xf32>
    %135 = arith.addf %133, %134 : vector<2x32xf32>
    %136 = math.tanh %135 : vector<2x32xf32>
    %137 = arith.mulf %132, %136 : vector<2x32xf32>
    %138 = arith.index_cast %c3_i32 : i32 to index
    %c0_36 = arith.constant 0 : index
    %c0_37 = arith.constant 0 : index
    %139 = vector.load %arg6[%138, %c0_36, %c0_37] : memref<8x2x32xf32, #tpu.memory_space<vmem>>, vector<1x2x32xf32>
    %140 = vector.shape_cast %139 : vector<1x2x32xf32> to vector<2x32xf32>
    %141 = vector.shape_cast %137 : vector<2x32xf32> to vector<1x2x32xf32>
    tpu.vector_store %arg6[%138, %c0_36, %c0_37], %141 {strides = array<i32>} : memref<8x2x32xf32, #tpu.memory_space<vmem>>, vector<1x2x32xf32>,
    %c4_i32 = arith.constant 4 : i32
    %142 = arith.index_cast %c4_i32 : i32 to index
    %c0_38 = arith.constant 0 : index
    %c0_39 = arith.constant 0 : index
    %143 = vector.load %arg2[%142, %c0_38, %c0_39] : memref<8x2x128xf32, #tpu.memory_space<vmem>>, vector<1x2x128xf32>
    %144 = vector.shape_cast %143 : vector<1x2x128xf32> to vector<2x128xf32>
    %cst_40 = arith.constant dense<0.000000e+00> : vector<2x128xf32>
    %145 = tpu.matmul %137, %3, %cst_40 {dimension_numbers = #tpu.dot_dimension_numbers<[1], [0], [0], [1], [0, 0, 1, 1], [], []>} : vector<2x32xf32>, vector<32x128xf32>, vector<2x128xf32> -> vector<2x128xf32>
    %146 = arith.addf %144, %145 : vector<2x128xf32>
    %147 = vector.extract_strided_slice %146 {offsets = [0, 0], sizes = [2, 32], strides = [1, 1]} : vector<2x128xf32> to vector<2x32xf32>
    %148 = arith.negf %147 : vector<2x32xf32>
    %149 = math.exp %148 : vector<2x32xf32>
    %cst_41 = arith.constant 1.000000e+00 : f32
    %150 = vector.broadcast %cst_41 : f32 to vector<2x32xf32>
    %151 = arith.addf %150, %149 : vector<2x32xf32>
    %152 = arith.divf %150, %151 : vector<2x32xf32>
    %153 = vector.extract_strided_slice %146 {offsets = [0, 32], sizes = [2, 32], strides = [1, 1]} : vector<2x128xf32> to vector<2x32xf32>
    %154 = arith.negf %153 : vector<2x32xf32>
    %155 = math.exp %154 : vector<2x32xf32>
    %cst_42 = arith.constant 1.000000e+00 : f32
    %156 = vector.broadcast %cst_42 : f32 to vector<2x32xf32>
    %157 = arith.addf %156, %155 : vector<2x32xf32>
    %158 = arith.divf %156, %157 : vector<2x32xf32>
    %159 = vector.extract_strided_slice %146 {offsets = [0, 64], sizes = [2, 32], strides = [1, 1]} : vector<2x128xf32> to vector<2x32xf32>
    %160 = math.tanh %159 : vector<2x32xf32>
    %161 = vector.extract_strided_slice %146 {offsets = [0, 96], sizes = [2, 32], strides = [1, 1]} : vector<2x128xf32> to vector<2x32xf32>
    %162 = arith.negf %161 : vector<2x32xf32>
    %163 = math.exp %162 : vector<2x32xf32>
    %cst_43 = arith.constant 1.000000e+00 : f32
    %164 = vector.broadcast %cst_43 : f32 to vector<2x32xf32>
    %165 = arith.addf %164, %163 : vector<2x32xf32>
    %166 = arith.divf %164, %165 : vector<2x32xf32>
    %167 = arith.mulf %158, %135 : vector<2x32xf32>
    %168 = arith.mulf %152, %160 : vector<2x32xf32>
    %169 = arith.addf %167, %168 : vector<2x32xf32>
    %170 = math.tanh %169 : vector<2x32xf32>
    %171 = arith.mulf %166, %170 : vector<2x32xf32>
    %172 = arith.index_cast %c4_i32 : i32 to index
    %c0_44 = arith.constant 0 : index
    %c0_45 = arith.constant 0 : index
    %173 = vector.load %arg6[%172, %c0_44, %c0_45] : memref<8x2x32xf32, #tpu.memory_space<vmem>>, vector<1x2x32xf32>
    %174 = vector.shape_cast %173 : vector<1x2x32xf32> to vector<2x32xf32>
    %175 = vector.shape_cast %171 : vector<2x32xf32> to vector<1x2x32xf32>
    tpu.vector_store %arg6[%172, %c0_44, %c0_45], %175 {strides = array<i32>} : memref<8x2x32xf32, #tpu.memory_space<vmem>>, vector<1x2x32xf32>,
    %c5_i32 = arith.constant 5 : i32
    %176 = arith.index_cast %c5_i32 : i32 to index
    %c0_46 = arith.constant 0 : index
    %c0_47 = arith.constant 0 : index
    %177 = vector.load %arg2[%176, %c0_46, %c0_47] : memref<8x2x128xf32, #tpu.memory_space<vmem>>, vector<1x2x128xf32>
    %178 = vector.shape_cast %177 : vector<1x2x128xf32> to vector<2x128xf32>
    %cst_48 = arith.constant dense<0.000000e+00> : vector<2x128xf32>
    %179 = tpu.matmul %171, %3, %cst_48 {dimension_numbers = #tpu.dot_dimension_numbers<[1], [0], [0], [1], [0, 0, 1, 1], [], []>} : vector<2x32xf32>, vector<32x128xf32>, vector<2x128xf32> -> vector<2x128xf32>
    %180 = arith.addf %178, %179 : vector<2x128xf32>
    %181 = vector.extract_strided_slice %180 {offsets = [0, 0], sizes = [2, 32], strides = [1, 1]} : vector<2x128xf32> to vector<2x32xf32>
    %182 = arith.negf %181 : vector<2x32xf32>
    %183 = math.exp %182 : vector<2x32xf32>
    %cst_49 = arith.constant 1.000000e+00 : f32
    %184 = vector.broadcast %cst_49 : f32 to vector<2x32xf32>
    %185 = arith.addf %184, %183 : vector<2x32xf32>
    %186 = arith.divf %184, %185 : vector<2x32xf32>
    %187 = vector.extract_strided_slice %180 {offsets = [0, 32], sizes = [2, 32], strides = [1, 1]} : vector<2x128xf32> to vector<2x32xf32>
    %188 = arith.negf %187 : vector<2x32xf32>
    %189 = math.exp %188 : vector<2x32xf32>
    %cst_50 = arith.constant 1.000000e+00 : f32
    %190 = vector.broadcast %cst_50 : f32 to vector<2x32xf32>
    %191 = arith.addf %190, %189 : vector<2x32xf32>
    %192 = arith.divf %190, %191 : vector<2x32xf32>
    %193 = vector.extract_strided_slice %180 {offsets = [0, 64], sizes = [2, 32], strides = [1, 1]} : vector<2x128xf32> to vector<2x32xf32>
    %194 = math.tanh %193 : vector<2x32xf32>
    %195 = vector.extract_strided_slice %180 {offsets = [0, 96], sizes = [2, 32], strides = [1, 1]} : vector<2x128xf32> to vector<2x32xf32>
    %196 = arith.negf %195 : vector<2x32xf32>
    %197 = math.exp %196 : vector<2x32xf32>
    %cst_51 = arith.constant 1.000000e+00 : f32
    %198 = vector.broadcast %cst_51 : f32 to vector<2x32xf32>
    %199 = arith.addf %198, %197 : vector<2x32xf32>
    %200 = arith.divf %198, %199 : vector<2x32xf32>
    %201 = arith.mulf %192, %169 : vector<2x32xf32>
    %202 = arith.mulf %186, %194 : vector<2x32xf32>
    %203 = arith.addf %201, %202 : vector<2x32xf32>
    %204 = math.tanh %203 : vector<2x32xf32>
    %205 = arith.mulf %200, %204 : vector<2x32xf32>
    %206 = arith.index_cast %c5_i32 : i32 to index
    %c0_52 = arith.constant 0 : index
    %c0_53 = arith.constant 0 : index
    %207 = vector.load %arg6[%206, %c0_52, %c0_53] : memref<8x2x32xf32, #tpu.memory_space<vmem>>, vector<1x2x32xf32>
    %208 = vector.shape_cast %207 : vector<1x2x32xf32> to vector<2x32xf32>
    %209 = vector.shape_cast %205 : vector<2x32xf32> to vector<1x2x32xf32>
    tpu.vector_store %arg6[%206, %c0_52, %c0_53], %209 {strides = array<i32>} : memref<8x2x32xf32, #tpu.memory_space<vmem>>, vector<1x2x32xf32>,
    %c6_i32 = arith.constant 6 : i32
    %210 = arith.index_cast %c6_i32 : i32 to index
    %c0_54 = arith.constant 0 : index
    %c0_55 = arith.constant 0 : index
    %211 = vector.load %arg2[%210, %c0_54, %c0_55] : memref<8x2x128xf32, #tpu.memory_space<vmem>>, vector<1x2x128xf32>
    %212 = vector.shape_cast %211 : vector<1x2x128xf32> to vector<2x128xf32>
    %cst_56 = arith.constant dense<0.000000e+00> : vector<2x128xf32>
    %213 = tpu.matmul %205, %3, %cst_56 {dimension_numbers = #tpu.dot_dimension_numbers<[1], [0], [0], [1], [0, 0, 1, 1], [], []>} : vector<2x32xf32>, vector<32x128xf32>, vector<2x128xf32> -> vector<2x128xf32>
    %214 = arith.addf %212, %213 : vector<2x128xf32>
    %215 = vector.extract_strided_slice %214 {offsets = [0, 0], sizes = [2, 32], strides = [1, 1]} : vector<2x128xf32> to vector<2x32xf32>
    %216 = arith.negf %215 : vector<2x32xf32>
    %217 = math.exp %216 : vector<2x32xf32>
    %cst_57 = arith.constant 1.000000e+00 : f32
    %218 = vector.broadcast %cst_57 : f32 to vector<2x32xf32>
    %219 = arith.addf %218, %217 : vector<2x32xf32>
    %220 = arith.divf %218, %219 : vector<2x32xf32>
    %221 = vector.extract_strided_slice %214 {offsets = [0, 32], sizes = [2, 32], strides = [1, 1]} : vector<2x128xf32> to vector<2x32xf32>
    %222 = arith.negf %221 : vector<2x32xf32>
    %223 = math.exp %222 : vector<2x32xf32>
    %cst_58 = arith.constant 1.000000e+00 : f32
    %224 = vector.broadcast %cst_58 : f32 to vector<2x32xf32>
    %225 = arith.addf %224, %223 : vector<2x32xf32>
    %226 = arith.divf %224, %225 : vector<2x32xf32>
    %227 = vector.extract_strided_slice %214 {offsets = [0, 64], sizes = [2, 32], strides = [1, 1]} : vector<2x128xf32> to vector<2x32xf32>
    %228 = math.tanh %227 : vector<2x32xf32>
    %229 = vector.extract_strided_slice %214 {offsets = [0, 96], sizes = [2, 32], strides = [1, 1]} : vector<2x128xf32> to vector<2x32xf32>
    %230 = arith.negf %229 : vector<2x32xf32>
    %231 = math.exp %230 : vector<2x32xf32>
    %cst_59 = arith.constant 1.000000e+00 : f32
    %232 = vector.broadcast %cst_59 : f32 to vector<2x32xf32>
    %233 = arith.addf %232, %231 : vector<2x32xf32>
    %234 = arith.divf %232, %233 : vector<2x32xf32>
    %235 = arith.mulf %226, %203 : vector<2x32xf32>
    %236 = arith.mulf %220, %228 : vector<2x32xf32>
    %237 = arith.addf %235, %236 : vector<2x32xf32>
    %238 = math.tanh %237 : vector<2x32xf32>
    %239 = arith.mulf %234, %238 : vector<2x32xf32>
    %240 = arith.index_cast %c6_i32 : i32 to index
    %c0_60 = arith.constant 0 : index
    %c0_61 = arith.constant 0 : index
    %241 = vector.load %arg6[%240, %c0_60, %c0_61] : memref<8x2x32xf32, #tpu.memory_space<vmem>>, vector<1x2x32xf32>
    %242 = vector.shape_cast %241 : vector<1x2x32xf32> to vector<2x32xf32>
    %243 = vector.shape_cast %239 : vector<2x32xf32> to vector<1x2x32xf32>
    tpu.vector_store %arg6[%240, %c0_60, %c0_61], %243 {strides = array<i32>} : memref<8x2x32xf32, #tpu.memory_space<vmem>>, vector<1x2x32xf32>,
    %c7_i32 = arith.constant 7 : i32
    %244 = arith.index_cast %c7_i32 : i32 to index
    %c0_62 = arith.constant 0 : index
    %c0_63 = arith.constant 0 : index
    %245 = vector.load %arg2[%244, %c0_62, %c0_63] : memref<8x2x128xf32, #tpu.memory_space<vmem>>, vector<1x2x128xf32>
    %246 = vector.shape_cast %245 : vector<1x2x128xf32> to vector<2x128xf32>
    %cst_64 = arith.constant dense<0.000000e+00> : vector<2x128xf32>
    %247 = tpu.matmul %239, %3, %cst_64 {dimension_numbers = #tpu.dot_dimension_numbers<[1], [0], [0], [1], [0, 0, 1, 1], [], []>} : vector<2x32xf32>, vector<32x128xf32>, vector<2x128xf32> -> vector<2x128xf32>
    %248 = arith.addf %246, %247 : vector<2x128xf32>
    %249 = vector.extract_strided_slice %248 {offsets = [0, 0], sizes = [2, 32], strides = [1, 1]} : vector<2x128xf32> to vector<2x32xf32>
    %250 = arith.negf %249 : vector<2x32xf32>
    %251 = math.exp %250 : vector<2x32xf32>
    %cst_65 = arith.constant 1.000000e+00 : f32
    %252 = vector.broadcast %cst_65 : f32 to vector<2x32xf32>
    %253 = arith.addf %252, %251 : vector<2x32xf32>
    %254 = arith.divf %252, %253 : vector<2x32xf32>
    %255 = vector.extract_strided_slice %248 {offsets = [0, 32], sizes = [2, 32], strides = [1, 1]} : vector<2x128xf32> to vector<2x32xf32>
    %256 = arith.negf %255 : vector<2x32xf32>
    %257 = math.exp %256 : vector<2x32xf32>
    %cst_66 = arith.constant 1.000000e+00 : f32
    %258 = vector.broadcast %cst_66 : f32 to vector<2x32xf32>
    %259 = arith.addf %258, %257 : vector<2x32xf32>
    %260 = arith.divf %258, %259 : vector<2x32xf32>
    %261 = vector.extract_strided_slice %248 {offsets = [0, 64], sizes = [2, 32], strides = [1, 1]} : vector<2x128xf32> to vector<2x32xf32>
    %262 = math.tanh %261 : vector<2x32xf32>
    %263 = vector.extract_strided_slice %248 {offsets = [0, 96], sizes = [2, 32], strides = [1, 1]} : vector<2x128xf32> to vector<2x32xf32>
    %264 = arith.negf %263 : vector<2x32xf32>
    %265 = math.exp %264 : vector<2x32xf32>
    %cst_67 = arith.constant 1.000000e+00 : f32
    %266 = vector.broadcast %cst_67 : f32 to vector<2x32xf32>
    %267 = arith.addf %266, %265 : vector<2x32xf32>
    %268 = arith.divf %266, %267 : vector<2x32xf32>
    %269 = arith.mulf %260, %237 : vector<2x32xf32>
    %270 = arith.mulf %254, %262 : vector<2x32xf32>
    %271 = arith.addf %269, %270 : vector<2x32xf32>
    %272 = math.tanh %271 : vector<2x32xf32>
    %273 = arith.mulf %268, %272 : vector<2x32xf32>
    %274 = arith.index_cast %c7_i32 : i32 to index
    %c0_68 = arith.constant 0 : index
    %c0_69 = arith.constant 0 : index
    %275 = vector.load %arg6[%274, %c0_68, %c0_69] : memref<8x2x32xf32, #tpu.memory_space<vmem>>, vector<1x2x32xf32>
    %276 = vector.shape_cast %275 : vector<1x2x32xf32> to vector<2x32xf32>
    %277 = vector.shape_cast %273 : vector<2x32xf32> to vector<1x2x32xf32>
    tpu.vector_store %arg6[%274, %c0_68, %c0_69], %277 {strides = array<i32>} : memref<8x2x32xf32, #tpu.memory_space<vmem>>, vector<1x2x32xf32>,
    %c8_i32 = arith.constant 8 : i32
    %c0_70 = arith.constant 0 : index
    %c0_71 = arith.constant 0 : index
    %278 = vector.load %arg7[%c0_70, %c0_71] : memref<2x32xf32, #tpu.memory_space<vmem>>, vector<2x32xf32>
    tpu.vector_store %arg7[%c0_70, %c0_71], %273 {strides = array<i32>} : memref<2x32xf32, #tpu.memory_space<vmem>>, vector<2x32xf32>,
    %c0_72 = arith.constant 0 : index
    %c0_73 = arith.constant 0 : index
    %279 = vector.load %arg8[%c0_72, %c0_73] : memref<2x32xf32, #tpu.memory_space<vmem>>, vector<2x32xf32>
    tpu.vector_store %arg8[%c0_72, %c0_73], %271 {strides = array<i32>} : memref<2x32xf32, #tpu.memory_space<vmem>>, vector<2x32xf32>,
    return
  }
  func.func @transform_0(%arg0: i32, %arg1: i32) -> (i32, i32, i32) {
    %c0_i32 = arith.constant 0 : i32
    %c0_i32_0 = arith.constant 0 : i32
    return %arg1, %arg0, %c0_i32 : i32, i32, i32
  }
  func.func @transform_1(%arg0: i32, %arg1: i32) -> (i32, i32) {
    %c0_i32 = arith.constant 0 : i32
    %c0_i32_0 = arith.constant 0 : i32
    return %arg0, %c0_i32 : i32, i32
  }
  func.func @transform_2(%arg0: i32, %arg1: i32) -> (i32, i32) {
    %c0_i32 = arith.constant 0 : i32
    %c0_i32_0 = arith.constant 0 : i32
    return %arg0, %c0_i32 : i32, i32
  }
  func.func @transform_3(%arg0: i32, %arg1: i32) -> (i32, i32) {
    %c0_i32 = arith.constant 0 : i32
    %c0_i32_0 = arith.constant 0 : i32
    %c0_i32_1 = arith.constant 0 : i32
    return %c0_i32, %c0_i32_0 : i32, i32
  }
  func.func @transform_4(%arg0: i32, %arg1: i32) -> (i32, i32, i32) {
    %c0_i32 = arith.constant 0 : i32
    %c0_i32_0 = arith.constant 0 : i32
    return %arg1, %arg0, %c0_i32 : i32, i32, i32
  }
  func.func @transform_5(%arg0: i32, %arg1: i32) -> (i32, i32) {
    %c0_i32 = arith.constant 0 : i32
    %c0_i32_0 = arith.constant 0 : i32
    return %arg0, %c0_i32 : i32, i32
  }
  func.func @transform_6(%arg0: i32, %arg1: i32) -> (i32, i32) {
    %c0_i32 = arith.constant 0 : i32
    %c0_i32_0 = arith.constant 0 : i32
    return %arg0, %c0_i32 : i32, i32
  }
}

</mosaic_0001>

<llo_original>
// kernel: lstm_model_forward.7
$region0: #{lstm_model_forward.7}
  #allocation0 [shape = 'u32[]', space=smem, size = 0x4, offset = 0x4, fixed_abs, tag = 'smem constant byte address 0x4 - core index']
  #allocation1 [shape = 'u32[144,128]{1,0:T(1,128)}', space=vmem, size = 0x12000, scoped, tag = 'internal scratch']
  %s0 = inlined_call_operand.vmem [shape: f32[16,32], index: 0, kind: input, shape index: {}]
  %s1 = inlined_call_operand.vmem [shape: f32[32,128], index: 1, kind: input, shape index: {}]
  %s2 = inlined_call_operand.vmem [shape: f32[1,128], index: 2, kind: input, shape index: {}]
  %s3 = inlined_call_operand.vmem [shape: f32[16,128], index: 3, kind: output, shape index: {}]
  %s4 = sld [smem:[#allocation0]]
  $region22: #{lstm_model_forward.7} parent=0
    _
  %s6 = ssub.s32 1, %s4
  %s7 = scalar_select 0, %s6, %s4
  // Predicated region
  $region2: #{lstm_model_forward.7} parent=0 // pred_check
    _
  $region3: #{lstm_model_forward.7} parent=0 // pred_check_branch
    %9 = sbr.rel (0) target = $region5
  $region4: #{lstm_model_forward.7} parent=0 // pred_region
    _
  $region5: #{lstm_model_forward.7} parent=0 // pred_fallthru
    _
  // Predicated region
  $region6: #{lstm_model_forward.7} parent=0 // pred_check
    _
  $region7: #{lstm_model_forward.7} parent=0 // pred_check_branch
    %11 = sbr.rel (0) target = $region9
  $region8: #{lstm_model_forward.7} parent=0 // pred_region
    _
  $region9: #{lstm_model_forward.7} parent=0 // pred_fallthru
    _
  // Predicated region
  $region10: #{lstm_model_forward.7} parent=0 // pred_check
    _
  $region11: #{lstm_model_forward.7} parent=0 // pred_check_branch
    %13 = sbr.rel (0) target = $region13
  $region12: #{lstm_model_forward.7} parent=0 // pred_region
    _
  $region13: #{lstm_model_forward.7} parent=0 // pred_fallthru
    _
  %v14 = vld [vmem:[%s0] sm:$0xff]
  %v15 = vld [vmem:[%s0 + $0x8] sm:$0xff]
  %v16 = vld [vmem:[%s1] sm:$0xff]
  %v17 = vld [vmem:[%s1 + $0x8] sm:$0xff]
  %v18 = vld [vmem:[%s1 + $0x10] sm:$0xff]
  %v19 = vld [vmem:[%s1 + $0x18] sm:$0xff]
  %v20 = vld [vmem:[%s2] sm:$0x1]
  %v22 = vlaneseq
  %v23 = vshrl.u32 %v22, 7
  %v24 = vsub.s32 0, %v23
  %v25 = vrot.slane %v20, %v24
  %vm27 = vcmask 261120
  %v29 = vsel %vm27, %v14, 0
  %v32 = vsel %vm27, %v15, 0
  %34 = vmatprep.subr.mxu0 0.0
  %35 = vmatpush1.msra.mxu0 %v16
  %36 = vmatprep.subr.mxu0 0.0
  %37 = vmatpush1.msra.mxu0 %v17
  %38 = vmatprep.subr.mxu0 0.0
  %39 = vmatpush1.msra.mxu0 %v18
  %40 = vmatprep.subr.mxu0 0.0
  %41 = vmatpush1.msra.mxu0 %v19
  %42 = vmatprep.subr.mxu0 0.0
  %43 = vmatpush1.msra.mxu0 0.0
  %44 = vmatprep.subr.mxu0 0.0
  %45 = vmatpush1.msra.mxu0 0.0
  %46 = vmatprep.subr.mxu0 0.0
  %47 = vmatpush1.msra.mxu0 0.0
  %48 = vmatprep.subr.mxu0 0.0
  %49 = vmatpush1.msra.mxu0 0.0
  %50 = vmatprep.subr.mxu0 0.0
  %51 = vmatpush1.msra.mxu0 0.0
  %52 = vmatprep.subr.mxu0 0.0
  %53 = vmatpush1.msra.mxu0 0.0
  %54 = vmatprep.subr.mxu0 0.0
  %55 = vmatpush1.msra.mxu0 0.0
  %56 = vmatprep.subr.mxu0 0.0
  %57 = vmatpush1.msra.mxu0 0.0
  %58 = vmatprep.subr.mxu0 0.0
  %59 = vmatpush1.msra.mxu0 0.0
  %60 = vmatprep.subr.mxu0 0.0
  %61 = vmatpush1.msra.mxu0 0.0
  %62 = vmatprep.subr.mxu0 0.0
  %63 = vmatpush1.msra.mxu0 0.0
  %64 = vmatprep.subr.mxu0 0.0
  %65 = vmatpush1.msra.mxu0 0.0
  %66 = vmatprep.subr.mxu0 0.0
  %67 = vmatpush1.msra.mxu0 0.0
  %68 = vmatprep.subr.mxu0 0.0
  %69 = vmatpush1.msra.mxu0 0.0
  %70 = vmatprep.subr.mxu0 0.0
  %71 = vmatpush1.msra.mxu0 0.0
  %72 = vmatprep.subr.mxu0 0.0
  %73 = vmatpush1.msra.mxu0 0.0
  %74 = vmatprep.subr.mxu0 0.0
  %75 = vmatpush1.msra.mxu0 0.0
  %76 = vmatprep.subr.mxu0 0.0
  %77 = vmatpush1.msra.mxu0 0.0
  %78 = vmatprep.subr.mxu0 0.0
  %79 = vmatpush1.msra.mxu0 0.0
  %80 = vmatprep.subr.mxu0 0.0
  %81 = vmatpush1.msra.mxu0 0.0
  %82 = vmatprep.subr.mxu0 0.0
  %83 = vmatpush1.msra.mxu0 0.0
  %84 = vmatprep.subr.mxu0 0.0
  %85 = vmatpush1.msra.mxu0 0.0
  %86 = vmatprep.subr.mxu0 0.0
  %87 = vmatpush1.msra.mxu0 0.0
  %88 = vmatprep.subr.mxu0 0.0
  %89 = vmatpush1.msra.mxu0 0.0
  %90 = vmatprep.subr.mxu0 0.0
  %91 = vmatpush1.msra.mxu0 0.0
  %92 = vmatprep.subr.mxu0 0.0
  %93 = vmatpush1.msra.mxu0 0.0
  %94 = vmatprep.subr.mxu0 0.0
  %95 = vmatpush1.msra.mxu0 0.0
  %96 = vmatprep.subr.mxu0 0.0
  %97 = vmatpush1.msra.mxu0 0.0
  %98 = vmatprep.mubr.f32.mxu0 0.0
  %99 = vmatmul.mubr.f32.gmra.mrb[0].mxu0 %v29
  %v100 = vpop.f32.mrb[0].mxu0
  %v101 = vadd.f32 %v25, %v100
  %v102 = vpop.f32.mrb[0].mxu0
  %103 = vmatprep.mubr.f32.mxu0 0.0
  %104 = vmatmul.mubr.f32.gmra.mrb[0].mxu0 %v32
  %v105 = vpop.f32.mrb[0].mxu0
  %v106 = vadd.f32 %v25, %v105
  %v107 = vpop.f32.mrb[0].mxu0
  %108 = vdwg.mxu0
  %109 = vst [vmem:[%s3] sm:$0xff] %v101
  %110 = vst [vmem:[%s3 + $0x8] sm:$0xff] %v106
  // Predicated region
  $region14: #{lstm_model_forward.7} parent=0 // pred_check
    _
  $region15: #{lstm_model_forward.7} parent=0 // pred_check_branch
    %112 = sbr.rel (0) target = $region17
  $region16: #{lstm_model_forward.7} parent=0 // pred_region
    _
  $region17: #{lstm_model_forward.7} parent=0 // pred_fallthru
    _
  // Predicated region
  $region18: #{lstm_model_forward.7} parent=0 // pred_check
    _
  $region19: #{lstm_model_forward.7} parent=0 // pred_check_branch
    %114 = sbr.rel (0) target = $region21
  $region20: #{lstm_model_forward.7} parent=0 // pred_region
    _
  $region21: #{lstm_model_forward.7} parent=0 // pred_fallthru
    _

// kernel: lstm_model_forward.9
$region0: #{lstm_model_forward.9}
  #allocation0 [shape = 'u32[]', space=smem, size = 0x4, offset = 0x4, fixed_abs, tag = 'smem constant byte address 0x4 - core index']
  #allocation1 [shape = 'u32[144,128]{1,0:T(1,128)}', space=vmem, size = 0x12000, scoped, tag = 'internal scratch']
  %s0 = inlined_call_operand.vmem [shape: f32[2,32], index: 0, kind: input, shape index: {}]
  %s1 = inlined_call_operand.vmem [shape: f32[32,32], index: 1, kind: input, shape index: {}]
  %s2 = inlined_call_operand.vmem [shape: f32[1,32], index: 2, kind: input, shape index: {}]
  %s3 = inlined_call_operand.hbm [shape: f32[2,32], index: 3, kind: output, shape index: {}]
  %s4 = sld [smem:[#allocation0]]
  $region22: #{lstm_model_forward.9} parent=0
    _
  %s6 = ssub.s32 1, %s4
  %s7 = scalar_select 0, %s6, %s4
  $region1: #{lstm_model_forward.9} parent=0
    #allocation2 [shape = 'u8[1024]{0}', space=vmem, size = 0x400, scoped, tag = 'output window, operand 0, single buffered']
    #allocation3 [shape = 's32[1]{0}', space=sflag, size = 0x4, scoped, tag = 'scoped memory for lstm_model_forward.9']
    %8 = vsyncpa [#allocation3], 0
    // Predicated region
    $region2: #{lstm_model_forward.9} parent=1 // pred_check
      _
    $region3: #{lstm_model_forward.9} parent=1 // pred_check_branch
      %10 = sbr.rel (0) target = $region5
    $region4: #{lstm_model_forward.9} parent=1 // pred_region
      _
    $region5: #{lstm_model_forward.9} parent=1 // pred_fallthru
      _
    // Predicated region
    $region6: #{lstm_model_forward.9} parent=1 // pred_check
      _
    $region7: #{lstm_model_forward.9} parent=1 // pred_check_branch
      %12 = sbr.rel (0) target = $region9
    $region8: #{lstm_model_forward.9} parent=1 // pred_region
      _
    $region9: #{lstm_model_forward.9} parent=1 // pred_fallthru
      _
    // Predicated region
    $region10: #{lstm_model_forward.9} parent=1 // pred_check
      _
    $region11: #{lstm_model_forward.9} parent=1 // pred_check_branch
      %14 = sbr.rel (0) target = $region13
    $region12: #{lstm_model_forward.9} parent=1 // pred_region
      _
    $region13: #{lstm_model_forward.9} parent=1 // pred_fallthru
      _
    %v15 = vld [vmem:[%s0] sm:$0x3]
    %v16 = vld [vmem:[%s1] sm:$0xff]
    %v17 = vld [vmem:[%s1 + $0x8] sm:$0xff]
    %v18 = vld [vmem:[%s1 + $0x10] sm:$0xff]
    %v19 = vld [vmem:[%s1 + $0x18] sm:$0xff]
    %v20 = vld [vmem:[%s2] sm:$0x1]
    %v22 = vlaneseq
    %v23 = vshrl.u32 %v22, 7
    %v24 = vsub.s32 0, %v23
    %v25 = vrot.slane %v20, %v24
    %vm27 = vcmask 261120
    %v29 = vsel %vm27, %v15, 0
    %31 = vmatprep.subr.mxu0 0.0
    %32 = vmatpush1.msra.mxu0 %v16
    %33 = vmatprep.subr.mxu0 0.0
    %34 = vmatpush1.msra.mxu0 %v17
    %35 = vmatprep.subr.mxu0 0.0
    %36 = vmatpush1.msra.mxu0 %v18
    %37 = vmatprep.subr.mxu0 0.0
    %38 = vmatpush1.msra.mxu0 %v19
    %39 = vmatprep.subr.mxu0 0.0
    %40 = vmatpush1.msra.mxu0 0.0
    %41 = vmatprep.subr.mxu0 0.0
    %42 = vmatpush1.msra.mxu0 0.0
    %43 = vmatprep.subr.mxu0 0.0
    %44 = vmatpush1.msra.mxu0 0.0
    %45 = vmatprep.subr.mxu0 0.0
    %46 = vmatpush1.msra.mxu0 0.0
    %47 = vmatprep.subr.mxu0 0.0
    %48 = vmatpush1.msra.mxu0 0.0
    %49 = vmatprep.subr.mxu0 0.0
    %50 = vmatpush1.msra.mxu0 0.0
    %51 = vmatprep.subr.mxu0 0.0
    %52 = vmatpush1.msra.mxu0 0.0
    %53 = vmatprep.subr.mxu0 0.0
    %54 = vmatpush1.msra.mxu0 0.0
    %55 = vmatprep.subr.mxu0 0.0
    %56 = vmatpush1.msra.mxu0 0.0
    %57 = vmatprep.subr.mxu0 0.0
    %58 = vmatpush1.msra.mxu0 0.0
    %59 = vmatprep.subr.mxu0 0.0
    %60 = vmatpush1.msra.mxu0 0.0
    %61 = vmatprep.subr.mxu0 0.0
    %62 = vmatpush1.msra.mxu0 0.0
    %63 = vmatprep.subr.mxu0 0.0
    %64 = vmatpush1.msra.mxu0 0.0
    %65 = vmatprep.subr.mxu0 0.0
    %66 = vmatpush1.msra.mxu0 0.0
    %67 = vmatprep.subr.mxu0 0.0
    %68 = vmatpush1.msra.mxu0 0.0
    %69 = vmatprep.subr.mxu0 0.0
    %70 = vmatpush1.msra.mxu0 0.0
    %71 = vmatprep.subr.mxu0 0.0
    %72 = vmatpush1.msra.mxu0 0.0
    %73 = vmatprep.subr.mxu0 0.0
    %74 = vmatpush1.msra.mxu0 0.0
    %75 = vmatprep.subr.mxu0 0.0
    %76 = vmatpush1.msra.mxu0 0.0
    %77 = vmatprep.subr.mxu0 0.0
    %78 = vmatpush1.msra.mxu0 0.0
    %79 = vmatprep.subr.mxu0 0.0
    %80 = vmatpush1.msra.mxu0 0.0
    %81 = vmatprep.subr.mxu0 0.0
    %82 = vmatpush1.msra.mxu0 0.0
    %83 = vmatprep.subr.mxu0 0.0
    %84 = vmatpush1.msra.mxu0 0.0
    %85 = vmatprep.subr.mxu0 0.0
    %86 = vmatpush1.msra.mxu0 0.0
    %87 = vmatprep.subr.mxu0 0.0
    %88 = vmatpush1.msra.mxu0 0.0
    %89 = vmatprep.subr.mxu0 0.0
    %90 = vmatpush1.msra.mxu0 0.0
    %91 = vmatprep.subr.mxu0 0.0
    %92 = vmatpush1.msra.mxu0 0.0
    %93 = vmatprep.subr.mxu0 0.0
    %94 = vmatpush1.msra.mxu0 0.0
    %95 = vmatprep.mubr.f32.mxu0 0.0
    %96 = vmatmul.mubr.f32.gmra.mrb[0].mxu0 %v29
    %v97 = vpop.f32.mrb[0].mxu0
    %v98 = vadd.f32 %v25, %v97
    %v99 = vpop.f32.mrb[0].mxu0
    %100 = vdwg.mxu0
    %vm101 = vcmask 254976
    %102 = vst.msk [vmem:[#allocation2] sm:$0x3] %vm101, %v98
    // Predicated region
    $region14: #{lstm_model_forward.9} parent=1 // pred_check
      _
    $region15: #{lstm_model_forward.9} parent=1 // pred_check_branch
      %104 = sbr.rel (0) target = $region17
    $region16: #{lstm_model_forward.9} parent=1 // pred_region
      %s106 = ssub.s32 32, 32
      %107 = vsyncadd [#allocation3], %s106
      %s109 = sshll.u32 [#allocation2], 4
      %s110 = int_to_ptr.vmem [resolvable:$true] %s109
      %112 = dma.vmem_to_hbm [thread:$0]  %s110, 32, %s3, [#allocation3]
    $region17: #{lstm_model_forward.9} parent=1 // pred_fallthru
      _
    // Predicated region
    $region18: #{lstm_model_forward.9} parent=1 // pred_check
      _
    $region19: #{lstm_model_forward.9} parent=1 // pred_check_branch
      %114 = sbr.rel (0) target = $region21
    $region20: #{lstm_model_forward.9} parent=1 // pred_region
      %115 = dma.done [#allocation3], 32
    $region21: #{lstm_model_forward.9} parent=1 // pred_fallthru
      _
    %116 = vsyncpa [#allocation3], 1

// kernel: lstm_model_forward.5
$region0: #{lstm_model_forward.5}
  #allocation0 [shape = 'u32[]', space=smem, size = 0x4, offset = 0x4, fixed_abs, tag = 'smem constant byte address 0x4 - core index']
  #allocation1 [shape = 'u32[144,128]{1,0:T(1,128)}', space=vmem, size = 0x12000, scoped, tag = 'internal scratch']
  %s0 = inlined_call_operand.vmem [shape: f32[16,16], index: 0, kind: input, shape index: {}]
  %s1 = inlined_call_operand.vmem [shape: f32[16,128], index: 1, kind: input, shape index: {}]
  %s2 = inlined_call_operand.vmem [shape: f32[1,128], index: 2, kind: input, shape index: {}]
  %s3 = inlined_call_operand.vmem [shape: f32[16,128], index: 3, kind: output, shape index: {}]
  %s4 = sld [smem:[#allocation0]]
  $region22: #{lstm_model_forward.5} parent=0
    _
  %s6 = ssub.s32 1, %s4
  %s7 = scalar_select 0, %s6, %s4
  // Predicated region
  $region2: #{lstm_model_forward.5} parent=0 // pred_check
    _
  $region3: #{lstm_model_forward.5} parent=0 // pred_check_branch
    %9 = sbr.rel (0) target = $region5
  $region4: #{lstm_model_forward.5} parent=0 // pred_region
    _
  $region5: #{lstm_model_forward.5} parent=0 // pred_fallthru
    _
  // Predicated region
  $region6: #{lstm_model_forward.5} parent=0 // pred_check
    _
  $region7: #{lstm_model_forward.5} parent=0 // pred_check_branch
    %11 = sbr.rel (0) target = $region9
  $region8: #{lstm_model_forward.5} parent=0 // pred_region
    _
  $region9: #{lstm_model_forward.5} parent=0 // pred_fallthru
    _
  // Predicated region
  $region10: #{lstm_model_forward.5} parent=0 // pred_check
    _
  $region11: #{lstm_model_forward.5} parent=0 // pred_check_branch
    %13 = sbr.rel (0) target = $region13
  $region12: #{lstm_model_forward.5} parent=0 // pred_region
    _
  $region13: #{lstm_model_forward.5} parent=0 // pred_fallthru
    _
  %v14 = vld [vmem:[%s0] sm:$0xff]
  %v15 = vld [vmem:[%s0 + $0x8] sm:$0xff]
  %v16 = vld [vmem:[%s1] sm:$0xff]
  %v17 = vld [vmem:[%s1 + $0x8] sm:$0xff]
  %v18 = vld [vmem:[%s2] sm:$0x1]
  %v20 = vlaneseq
  %v21 = vshrl.u32 %v20, 7
  %v22 = vsub.s32 0, %v21
  %v23 = vrot.slane %v18, %v22
  %vm25 = vcmask 130048
  %v27 = vsel %vm25, %v14, 0
  %v30 = vsel %vm25, %v15, 0
  %32 = vmatprep.subr.mxu0 0.0
  %33 = vmatpush1.msra.mxu0 %v16
  %34 = vmatprep.subr.mxu0 0.0
  %35 = vmatpush1.msra.mxu0 %v17
  %36 = vmatprep.subr.mxu0 0.0
  %37 = vmatpush1.msra.mxu0 0.0
  %38 = vmatprep.subr.mxu0 0.0
  %39 = vmatpush1.msra.mxu0 0.0
  %40 = vmatprep.subr.mxu0 0.0
  %41 = vmatpush1.msra.mxu0 0.0
  %42 = vmatprep.subr.mxu0 0.0
  %43 = vmatpush1.msra.mxu0 0.0
  %44 = vmatprep.subr.mxu0 0.0
  %45 = vmatpush1.msra.mxu0 0.0
  %46 = vmatprep.subr.mxu0 0.0
  %47 = vmatpush1.msra.mxu0 0.0
  %48 = vmatprep.subr.mxu0 0.0
  %49 = vmatpush1.msra.mxu0 0.0
  %50 = vmatprep.subr.mxu0 0.0
  %51 = vmatpush1.msra.mxu0 0.0
  %52 = vmatprep.subr.mxu0 0.0
  %53 = vmatpush1.msra.mxu0 0.0
  %54 = vmatprep.subr.mxu0 0.0
  %55 = vmatpush1.msra.mxu0 0.0
  %56 = vmatprep.subr.mxu0 0.0
  %57 = vmatpush1.msra.mxu0 0.0
  %58 = vmatprep.subr.mxu0 0.0
  %59 = vmatpush1.msra.mxu0 0.0
  %60 = vmatprep.subr.mxu0 0.0
  %61 = vmatpush1.msra.mxu0 0.0
  %62 = vmatprep.subr.mxu0 0.0
  %63 = vmatpush1.msra.mxu0 0.0
  %64 = vmatprep.subr.mxu0 0.0
  %65 = vmatpush1.msra.mxu0 0.0
  %66 = vmatprep.subr.mxu0 0.0
  %67 = vmatpush1.msra.mxu0 0.0
  %68 = vmatprep.subr.mxu0 0.0
  %69 = vmatpush1.msra.mxu0 0.0
  %70 = vmatprep.subr.mxu0 0.0
  %71 = vmatpush1.msra.mxu0 0.0
  %72 = vmatprep.subr.mxu0 0.0
  %73 = vmatpush1.msra.mxu0 0.0
  %74 = vmatprep.subr.mxu0 0.0
  %75 = vmatpush1.msra.mxu0 0.0
  %76 = vmatprep.subr.mxu0 0.0
  %77 = vmatpush1.msra.mxu0 0.0
  %78 = vmatprep.subr.mxu0 0.0
  %79 = vmatpush1.msra.mxu0 0.0
  %80 = vmatprep.subr.mxu0 0.0
  %81 = vmatpush1.msra.mxu0 0.0
  %82 = vmatprep.subr.mxu0 0.0
  %83 = vmatpush1.msra.mxu0 0.0
  %84 = vmatprep.subr.mxu0 0.0
  %85 = vmatpush1.msra.mxu0 0.0
  %86 = vmatprep.subr.mxu0 0.0
  %87 = vmatpush1.msra.mxu0 0.0
  %88 = vmatprep.subr.mxu0 0.0
  %89 = vmatpush1.msra.mxu0 0.0
  %90 = vmatprep.subr.mxu0 0.0
  %91 = vmatpush1.msra.mxu0 0.0
  %92 = vmatprep.subr.mxu0 0.0
  %93 = vmatpush1.msra.mxu0 0.0
  %94 = vmatprep.subr.mxu0 0.0
  %95 = vmatpush1.msra.mxu0 0.0
  %96 = vmatprep.mubr.f32.mxu0 0.0
  %97 = vmatmul.mubr.f32.gmra.mrb[0].mxu0 %v27
  %v98 = vpop.f32.mrb[0].mxu0
  %v99 = vadd.f32 %v23, %v98
  %v100 = vpop.f32.mrb[0].mxu0
  %101 = vmatprep.mubr.f32.mxu0 0.0
  %102 = vmatmul.mubr.f32.gmra.mrb[0].mxu0 %v30
  %v103 = vpop.f32.mrb[0].mxu0
  %v104 = vadd.f32 %v23, %v103
  %v105 = vpop.f32.mrb[0].mxu0
  %106 = vdwg.mxu0
  %107 = vst [vmem:[%s3] sm:$0xff] %v99
  %108 = vst [vmem:[%s3 + $0x8] sm:$0xff] %v104
  // Predicated region
  $region14: #{lstm_model_forward.5} parent=0 // pred_check
    _
  $region15: #{lstm_model_forward.5} parent=0 // pred_check_branch
    %110 = sbr.rel (0) target = $region17
  $region16: #{lstm_model_forward.5} parent=0 // pred_region
    _
  $region17: #{lstm_model_forward.5} parent=0 // pred_fallthru
    _
  // Predicated region
  $region18: #{lstm_model_forward.5} parent=0 // pred_check
    _
  $region19: #{lstm_model_forward.5} parent=0 // pred_check_branch
    %112 = sbr.rel (0) target = $region21
  $region20: #{lstm_model_forward.5} parent=0 // pred_region
    _
  $region21: #{lstm_model_forward.5} parent=0 // pred_fallthru
    _

// kernel: lstm_model_forward.6
$region0: #{lstm_model_forward.6}
  #allocation0 [shape = 'u32[]', space=smem, size = 0x4, offset = 0x4, fixed_abs, tag = 'smem constant byte address 0x4 - core index']
  #allocation1 [shape = 'u32[144,128]{1,0:T(1,128)}', space=vmem, size = 0x12000, scoped, tag = 'internal scratch']
  %s0 = inlined_call_operand.vmem [shape: f32[8,2,128], index: 0, kind: input, shape index: {}]
  %s1 = inlined_call_operand.vmem [shape: f32[2,32], index: 1, kind: input, shape index: {}]
  %s2 = inlined_call_operand.vmem [shape: f32[2,32], index: 2, kind: input, shape index: {}]
  %s3 = inlined_call_operand.vmem [shape: f32[32,128], index: 3, kind: input, shape index: {}]
  %s4 = inlined_call_operand.vmem [shape: f32[8,2,32], index: 4, kind: output, shape index: {0}]
  %s5 = inlined_call_operand.vmem [shape: f32[2,32], index: 5, kind: output, shape index: {1}]
  %s6 = inlined_call_operand.vmem [shape: f32[2,32], index: 6, kind: output, shape index: {2}]
  %7 = xla_tuple %s4, %s5, %s6
  %s8 = sld [smem:[#allocation0]]
  $region46: #{lstm_model_forward.6} parent=0
    _
  %s10 = ssub.s32 1, %s8
  %s11 = scalar_select 0, %s10, %s8
  // Predicated region
  $region2: #{lstm_model_forward.6} parent=0 // pred_check
    _
  $region3: #{lstm_model_forward.6} parent=0 // pred_check_branch
    %13 = sbr.rel (0) target = $region5
  $region4: #{lstm_model_forward.6} parent=0 // pred_region
    _
  $region5: #{lstm_model_forward.6} parent=0 // pred_fallthru
    _
  // Predicated region
  $region6: #{lstm_model_forward.6} parent=0 // pred_check
    _
  $region7: #{lstm_model_forward.6} parent=0 // pred_check_branch
    %15 = sbr.rel (0) target = $region9
  $region8: #{lstm_model_forward.6} parent=0 // pred_region
    _
  $region9: #{lstm_model_forward.6} parent=0 // pred_fallthru
    _
  // Predicated region
  $region10: #{lstm_model_forward.6} parent=0 // pred_check
    _
  $region11: #{lstm_model_forward.6} parent=0 // pred_check_branch
    %17 = sbr.rel (0) target = $region13
  $region12: #{lstm_model_forward.6} parent=0 // pred_region
    _
  $region13: #{lstm_model_forward.6} parent=0 // pred_fallthru
    _
  // Predicated region
  $region14: #{lstm_model_forward.6} parent=0 // pred_check
    _
  $region15: #{lstm_model_forward.6} parent=0 // pred_check_branch
    %19 = sbr.rel (0) target = $region17
  $region16: #{lstm_model_forward.6} parent=0 // pred_region
    _
  $region17: #{lstm_model_forward.6} parent=0 // pred_fallthru
    _
  %p20 = scmp.eq.s32.totalorder 0, 0
  // Predicated region
  $region18: #{lstm_model_forward.6} parent=0 // pred_check
    %p21 = pneg %p20
  $region19: #{lstm_model_forward.6} parent=0 // pred_check_branch
    %23 = sbr.rel (%p21) target = $region21
  $region20: #{lstm_model_forward.6} parent=0 // pred_region
    %v24 = vld [vmem:[%s1] sm:$0x3]
    %vm25 = vcmask 254976
    %26 = vst.msk [vmem:[%s5] sm:$0x3] %vm25, %v24
    %v27 = vld [vmem:[%s2] sm:$0x3]
    %28 = vst.msk [vmem:[%s6] sm:$0x3] %vm25, %v27
  $region21: #{lstm_model_forward.6} parent=0 // pred_fallthru
    _
  %v29 = vld [vmem:[%s3] sm:$0xff]
  %v30 = vld [vmem:[%s3 + $0x8] sm:$0xff]
  %v31 = vld [vmem:[%s3 + $0x10] sm:$0xff]
  %v32 = vld [vmem:[%s3 + $0x18] sm:$0xff]
  %v33 = vld [vmem:[%s5] sm:$0x3]
  %v34 = vld [vmem:[%s6] sm:$0x3]
  %v35 = vld [vmem:[%s0] sm:$0x3]
  %vm36 = vcmask 261120
  %v38 = vsel %vm36, %v33, 0
  %40 = vmatprep.subr.mxu0 0.0
  %41 = vmatpush1.msra.mxu0 %v29
  %42 = vmatprep.subr.mxu0 0.0
  %43 = vmatpush1.msra.mxu0 %v30
  %44 = vmatprep.subr.mxu0 0.0
  %45 = vmatpush1.msra.mxu0 %v31
  %46 = vmatprep.subr.mxu0 0.0
  %47 = vmatpush1.msra.mxu0 %v32
  %48 = vmatprep.subr.mxu0 0.0
  %49 = vmatpush1.msra.mxu0 0.0
  %50 = vmatprep.subr.mxu0 0.0
  %51 = vmatpush1.msra.mxu0 0.0
  %52 = vmatprep.subr.mxu0 0.0
  %53 = vmatpush1.msra.mxu0 0.0
  %54 = vmatprep.subr.mxu0 0.0
  %55 = vmatpush1.msra.mxu0 0.0
  %56 = vmatprep.subr.mxu0 0.0
  %57 = vmatpush1.msra.mxu0 0.0
  %58 = vmatprep.subr.mxu0 0.0
  %59 = vmatpush1.msra.mxu0 0.0
  %60 = vmatprep.subr.mxu0 0.0
  %61 = vmatpush1.msra.mxu0 0.0
  %62 = vmatprep.subr.mxu0 0.0
  %63 = vmatpush1.msra.mxu0 0.0
  %64 = vmatprep.subr.mxu0 0.0
  %65 = vmatpush1.msra.mxu0 0.0
  %66 = vmatprep.subr.mxu0 0.0
  %67 = vmatpush1.msra.mxu0 0.0
  %68 = vmatprep.subr.mxu0 0.0
  %69 = vmatpush1.msra.mxu0 0.0
  %70 = vmatprep.subr.mxu0 0.0
  %71 = vmatpush1.msra.mxu0 0.0
  %72 = vmatprep.subr.mxu0 0.0
  %73 = vmatpush1.msra.mxu0 0.0
  %74 = vmatprep.subr.mxu0 0.0
  %75 = vmatpush1.msra.mxu0 0.0
  %76 = vmatprep.subr.mxu0 0.0
  %77 = vmatpush1.msra.mxu0 0.0
  %78 = vmatprep.subr.mxu0 0.0
  %79 = vmatpush1.msra.mxu0 0.0
  %80 = vmatprep.subr.mxu0 0.0
  %81 = vmatpush1.msra.mxu0 0.0
  %82 = vmatprep.subr.mxu0 0.0
  %83 = vmatpush1.msra.mxu0 0.0
  %84 = vmatprep.subr.mxu0 0.0
  %85 = vmatpush1.msra.mxu0 0.0
  %86 = vmatprep.subr.mxu0 0.0
  %87 = vmatpush1.msra.mxu0 0.0
  %88 = vmatprep.subr.mxu0 0.0
  %89 = vmatpush1.msra.mxu0 0.0
  %90 = vmatprep.subr.mxu0 0.0
  %91 = vmatpush1.msra.mxu0 0.0
  %92 = vmatprep.subr.mxu0 0.0
  %93 = vmatpush1.msra.mxu0 0.0
  %94 = vmatprep.subr.mxu0 0.0
  %95 = vmatpush1.msra.mxu0 0.0
  %96 = vmatprep.subr.mxu0 0.0
  %97 = vmatpush1.msra.mxu0 0.0
  %98 = vmatprep.subr.mxu0 0.0
  %99 = vmatpush1.msra.mxu0 0.0
  %100 = vmatprep.subr.mxu0 0.0
  %101 = vmatpush1.msra.mxu0 0.0
  %102 = vmatprep.subr.mxu0 0.0
  %103 = vmatpush1.msra.mxu0 0.0
  %104 = vmatprep.mubr.f32.mxu0 0.0
  %105 = vmatmul.mubr.f32.gmra.mrb[0].mxu0 %v38
  %v106 = vpop.f32.mrb[0].mxu0
  %v107 = vadd.f32 0.0, %v106
  %v108 = vpop.f32.mrb[0].mxu0
  %109 = vdwg.mxu0
  %v110 = vadd.f32 %v35, %v107
  %v111 = vxor.u32 %v110, 2147483648
  %v112 = vmul.f32 %v111, 1.442695
  %v113 = vpow.pop %v112
  %v114 = vadd.f32 %v113, 1.0
  %v115 = vrcp.pop %v114
  %v116 = vmul.f32 1.0, %v115
  %v117 = vtanh.pop %v110
  %119 = vrot.lane.b32.xlu0 %v34, 32
  %v120 = vpop.permute.xlu0 %119
  %v122 = vmul.f32 %v116, %v120
  %124 = vrot.lane.b32.xlu0 %v117, 64
  %v125 = vpop.permute.xlu0 %124
  %v127 = vmul.f32 %v116, %v125
  %129 = vrot.lane.b32.xlu0 %v127, 32
  %v130 = vpop.permute.xlu0 %129
  %v132 = vadd.f32 %v122, %v130
  %v133 = vtanh.pop %v132
  %135 = vrot.lane.b32.xlu0 %v133, 64
  %v136 = vpop.permute.xlu0 %135
  %v138 = vmul.f32 %v116, %v136
  %140 = vrot.lane.b32.xlu0 %v138, 32
  %v141 = vpop.permute.xlu0 %140
  %vm143 = vcmask 254976
  %144 = vst.msk [vmem:[%s4] sm:$0x3] %vm143, %v141
  %s145 = scalar_lea.vmem %s0, 2
  %v146 = vld [vmem:[%s145] sm:$0x3]
  %v147 = vsel %vm36, %v141, 0
  %149 = vmatprep.subr.mxu0 0.0
  %150 = vmatpush1.msra.mxu0 %v29
  %151 = vmatprep.subr.mxu0 0.0
  %152 = vmatpush1.msra.mxu0 %v30
  %153 = vmatprep.subr.mxu0 0.0
  %154 = vmatpush1.msra.mxu0 %v31
  %155 = vmatprep.subr.mxu0 0.0
  %156 = vmatpush1.msra.mxu0 %v32
  %157 = vmatprep.subr.mxu0 0.0
  %158 = vmatpush1.msra.mxu0 0.0
  %159 = vmatprep.subr.mxu0 0.0
  %160 = vmatpush1.msra.mxu0 0.0
  %161 = vmatprep.subr.mxu0 0.0
  %162 = vmatpush1.msra.mxu0 0.0
  %163 = vmatprep.subr.mxu0 0.0
  %164 = vmatpush1.msra.mxu0 0.0
  %165 = vmatprep.subr.mxu0 0.0
  %166 = vmatpush1.msra.mxu0 0.0
  %167 = vmatprep.subr.mxu0 0.0
  %168 = vmatpush1.msra.mxu0 0.0
  %169 = vmatprep.subr.mxu0 0.0
  %170 = vmatpush1.msra.mxu0 0.0
  %171 = vmatprep.subr.mxu0 0.0
  %172 = vmatpush1.msra.mxu0 0.0
  %173 = vmatprep.subr.mxu0 0.0
  %174 = vmatpush1.msra.mxu0 0.0
  %175 = vmatprep.subr.mxu0 0.0
  %176 = vmatpush1.msra.mxu0 0.0
  %177 = vmatprep.subr.mxu0 0.0
  %178 = vmatpush1.msra.mxu0 0.0
  %179 = vmatprep.subr.mxu0 0.0
  %180 = vmatpush1.msra.mxu0 0.0
  %181 = vmatprep.subr.mxu0 0.0
  %182 = vmatpush1.msra.mxu0 0.0
  %183 = vmatprep.subr.mxu0 0.0
  %184 = vmatpush1.msra.mxu0 0.0
  %185 = vmatprep.subr.mxu0 0.0
  %186 = vmatpush1.msra.mxu0 0.0
  %187 = vmatprep.subr.mxu0 0.0
  %188 = vmatpush1.msra.mxu0 0.0
  %189 = vmatprep.subr.mxu0 0.0
  %190 = vmatpush1.msra.mxu0 0.0
  %191 = vmatprep.subr.mxu0 0.0
  %192 = vmatpush1.msra.mxu0 0.0
  %193 = vmatprep.subr.mxu0 0.0
  %194 = vmatpush1.msra.mxu0 0.0
  %195 = vmatprep.subr.mxu0 0.0
  %196 = vmatpush1.msra.mxu0 0.0
  %197 = vmatprep.subr.mxu0 0.0
  %198 = vmatpush1.msra.mxu0 0.0
  %199 = vmatprep.subr.mxu0 0.0
  %200 = vmatpush1.msra.mxu0 0.0
  %201 = vmatprep.subr.mxu0 0.0
  %202 = vmatpush1.msra.mxu0 0.0
  %203 = vmatprep.subr.mxu0 0.0
  %204 = vmatpush1.msra.mxu0 0.0
  %205 = vmatprep.subr.mxu0 0.0
  %206 = vmatpush1.msra.mxu0 0.0
  %207 = vmatprep.subr.mxu0 0.0
  %208 = vmatpush1.msra.mxu0 0.0
  %209 = vmatprep.subr.mxu0 0.0
  %210 = vmatpush1.msra.mxu0 0.0
  %211 = vmatprep.subr.mxu0 0.0
  %212 = vmatpush1.msra.mxu0 0.0
  %213 = vmatprep.mubr.f32.mxu0 0.0
  %214 = vmatmul.mubr.f32.gmra.mrb[0].mxu0 %v147
  %v215 = vpop.f32.mrb[0].mxu0
  %v216 = vadd.f32 0.0, %v215
  %v217 = vpop.f32.mrb[0].mxu0
  %218 = vdwg.mxu0
  %v219 = vadd.f32 %v146, %v216
  %v220 = vxor.u32 %v219, 2147483648
  %v221 = vmul.f32 %v220, 1.442695
  %v222 = vpow.pop %v221
  %v223 = vadd.f32 %v222, 1.0
  %v224 = vrcp.pop %v223
  %v225 = vmul.f32 1.0, %v224
  %v226 = vtanh.pop %v219
  %v227 = vmul.f32 %v225, %v132
  %229 = vrot.lane.b32.xlu0 %v226, 64
  %v230 = vpop.permute.xlu0 %229
  %v232 = vmul.f32 %v225, %v230
  %234 = vrot.lane.b32.xlu0 %v232, 32
  %v235 = vpop.permute.xlu0 %234
  %v237 = vadd.f32 %v227, %v235
  %v238 = vtanh.pop %v237
  %240 = vrot.lane.b32.xlu0 %v238, 64
  %v241 = vpop.permute.xlu0 %240
  %v243 = vmul.f32 %v225, %v241
  %245 = vrot.lane.b32.xlu0 %v243, 32
  %v246 = vpop.permute.xlu0 %245
  %s248 = scalar_lea.vmem %s4, 2
  %249 = vst.msk [vmem:[%s248] sm:$0x3] %vm143, %v246
  %s250 = scalar_lea.vmem %s0, 4
  %v251 = vld [vmem:[%s250] sm:$0x3]
  %v252 = vsel %vm36, %v246, 0
  %254 = vmatprep.subr.mxu0 0.0
  %255 = vmatpush1.msra.mxu0 %v29
  %256 = vmatprep.subr.mxu0 0.0
  %257 = vmatpush1.msra.mxu0 %v30
  %258 = vmatprep.subr.mxu0 0.0
  %259 = vmatpush1.msra.mxu0 %v31
  %260 = vmatprep.subr.mxu0 0.0
  %261 = vmatpush1.msra.mxu0 %v32
  %262 = vmatprep.subr.mxu0 0.0
  %263 = vmatpush1.msra.mxu0 0.0
  %264 = vmatprep.subr.mxu0 0.0
  %265 = vmatpush1.msra.mxu0 0.0
  %266 = vmatprep.subr.mxu0 0.0
  %267 = vmatpush1.msra.mxu0 0.0
  %268 = vmatprep.subr.mxu0 0.0
  %269 = vmatpush1.msra.mxu0 0.0
  %270 = vmatprep.subr.mxu0 0.0
  %271 = vmatpush1.msra.mxu0 0.0
  %272 = vmatprep.subr.mxu0 0.0
  %273 = vmatpush1.msra.mxu0 0.0
  %274 = vmatprep.subr.mxu0 0.0
  %275 = vmatpush1.msra.mxu0 0.0
  %276 = vmatprep.subr.mxu0 0.0
  %277 = vmatpush1.msra.mxu0 0.0
  %278 = vmatprep.subr.mxu0 0.0
  %279 = vmatpush1.msra.mxu0 0.0
  %280 = vmatprep.subr.mxu0 0.0
  %281 = vmatpush1.msra.mxu0 0.0
  %282 = vmatprep.subr.mxu0 0.0
  %283 = vmatpush1.msra.mxu0 0.0
  %284 = vmatprep.subr.mxu0 0.0
  %285 = vmatpush1.msra.mxu0 0.0
  %286 = vmatprep.subr.mxu0 0.0
  %287 = vmatpush1.msra.mxu0 0.0
  %288 = vmatprep.subr.mxu0 0.0
  %289 = vmatpush1.msra.mxu0 0.0
  %290 = vmatprep.subr.mxu0 0.0
  %291 = vmatpush1.msra.mxu0 0.0
  %292 = vmatprep.subr.mxu0 0.0
  %293 = vmatpush1.msra.mxu0 0.0
  %294 = vmatprep.subr.mxu0 0.0
  %295 = vmatpush1.msra.mxu0 0.0
  %296 = vmatprep.subr.mxu0 0.0
  %297 = vmatpush1.msra.mxu0 0.0
  %298 = vmatprep.subr.mxu0 0.0
  %299 = vmatpush1.msra.mxu0 0.0
  %300 = vmatprep.subr.mxu0 0.0
  %301 = vmatpush1.msra.mxu0 0.0
  %302 = vmatprep.subr.mxu0 0.0
  %303 = vmatpush1.msra.mxu0 0.0
  %304 = vmatprep.subr.mxu0 0.0
  %305 = vmatpush1.msra.mxu0 0.0
  %306 = vmatprep.subr.mxu0 0.0
  %307 = vmatpush1.msra.mxu0 0.0
  %308 = vmatprep.subr.mxu0 0.0
  %309 = vmatpush1.msra.mxu0 0.0
  %310 = vmatprep.subr.mxu0 0.0
  %311 = vmatpush1.msra.mxu0 0.0
  %312 = vmatprep.subr.mxu0 0.0
  %313 = vmatpush1.msra.mxu0 0.0
  %314 = vmatprep.subr.mxu0 0.0
  %315 = vmatpush1.msra.mxu0 0.0
  %316 = vmatprep.subr.mxu0 0.0
  %317 = vmatpush1.msra.mxu0 0.0
  %318 = vmatprep.mubr.f32.mxu0 0.0
  %319 = vmatmul.mubr.f32.gmra.mrb[0].mxu0 %v252
  %v320 = vpop.f32.mrb[0].mxu0
  %v321 = vadd.f32 0.0, %v320
  %v322 = vpop.f32.mrb[0].mxu0
  %323 = vdwg.mxu0
  %v324 = vadd.f32 %v251, %v321
  %v325 = vxor.u32 %v324, 2147483648
  %v326 = vmul.f32 %v325, 1.442695
  %v327 = vpow.pop %v326
  %v328 = vadd.f32 %v327, 1.0
  %v329 = vrcp.pop %v328
  %v330 = vmul.f32 1.0, %v329
  %v331 = vtanh.pop %v324
  %v332 = vmul.f32 %v330, %v237
  %334 = vrot.lane.b32.xlu0 %v331, 64
  %v335 = vpop.permute.xlu0 %334
  %v337 = vmul.f32 %v330, %v335
  %339 = vrot.lane.b32.xlu0 %v337, 32
  %v340 = vpop.permute.xlu0 %339
  %v342 = vadd.f32 %v332, %v340
  %v343 = vtanh.pop %v342
  %345 = vrot.lane.b32.xlu0 %v343, 64
  %v346 = vpop.permute.xlu0 %345
  %v348 = vmul.f32 %v330, %v346
  %350 = vrot.lane.b32.xlu0 %v348, 32
  %v351 = vpop.permute.xlu0 %350
  %s353 = scalar_lea.vmem %s4, 4
  %354 = vst.msk [vmem:[%s353] sm:$0x3] %vm143, %v351
  %s355 = scalar_lea.vmem %s0, 6
  %v356 = vld [vmem:[%s355] sm:$0x3]
  %v357 = vsel %vm36, %v351, 0
  %359 = vmatprep.subr.mxu0 0.0
  %360 = vmatpush1.msra.mxu0 %v29
  %361 = vmatprep.subr.mxu0 0.0
  %362 = vmatpush1.msra.mxu0 %v30
  %363 = vmatprep.subr.mxu0 0.0
  %364 = vmatpush1.msra.mxu0 %v31
  %365 = vmatprep.subr.mxu0 0.0
  %366 = vmatpush1.msra.mxu0 %v32
  %367 = vmatprep.subr.mxu0 0.0
  %368 = vmatpush1.msra.mxu0 0.0
  %369 = vmatprep.subr.mxu0 0.0
  %370 = vmatpush1.msra.mxu0 0.0
  %371 = vmatprep.subr.mxu0 0.0
  %372 = vmatpush1.msra.mxu0 0.0
  %373 = vmatprep.subr.mxu0 0.0
  %374 = vmatpush1.msra.mxu0 0.0
  %375 = vmatprep.subr.mxu0 0.0
  %376 = vmatpush1.msra.mxu0 0.0
  %377 = vmatprep.subr.mxu0 0.0
  %378 = vmatpush1.msra.mxu0 0.0
  %379 = vmatprep.subr.mxu0 0.0
  %380 = vmatpush1.msra.mxu0 0.0
  %381 = vmatprep.subr.mxu0 0.0
  %382 = vmatpush1.msra.mxu0 0.0
  %383 = vmatprep.subr.mxu0 0.0
  %384 = vmatpush1.msra.mxu0 0.0
  %385 = vmatprep.subr.mxu0 0.0
  %386 = vmatpush1.msra.mxu0 0.0
  %387 = vmatprep.subr.mxu0 0.0
  %388 = vmatpush1.msra.mxu0 0.0
  %389 = vmatprep.subr.mxu0 0.0
  %390 = vmatpush1.msra.mxu0 0.0
  %391 = vmatprep.subr.mxu0 0.0
  %392 = vmatpush1.msra.mxu0 0.0
  %393 = vmatprep.subr.mxu0 0.0
  %394 = vmatpush1.msra.mxu0 0.0
  %395 = vmatprep.subr.mxu0 0.0
  %396 = vmatpush1.msra.mxu0 0.0
  %397 = vmatprep.subr.mxu0 0.0
  %398 = vmatpush1.msra.mxu0 0.0
  %399 = vmatprep.subr.mxu0 0.0
  %400 = vmatpush1.msra.mxu0 0.0
  %401 = vmatprep.subr.mxu0 0.0
  %402 = vmatpush1.msra.mxu0 0.0
  %403 = vmatprep.subr.mxu0 0.0
  %404 = vmatpush1.msra.mxu0 0.0
  %405 = vmatprep.subr.mxu0 0.0
  %406 = vmatpush1.msra.mxu0 0.0
  %407 = vmatprep.subr.mxu0 0.0
  %408 = vmatpush1.msra.mxu0 0.0
  %409 = vmatprep.subr.mxu0 0.0
  %410 = vmatpush1.msra.mxu0 0.0
  %411 = vmatprep.subr.mxu0 0.0
  %412 = vmatpush1.msra.mxu0 0.0
  %413 = vmatprep.subr.mxu0 0.0
  %414 = vmatpush1.msra.mxu0 0.0
  %415 = vmatprep.subr.mxu0 0.0
  %416 = vmatpush1.msra.mxu0 0.0
  %417 = vmatprep.subr.mxu0 0.0
  %418 = vmatpush1.msra.mxu0 0.0
  %419 = vmatprep.subr.mxu0 0.0
  %420 = vmatpush1.msra.mxu0 0.0
  %421 = vmatprep.subr.mxu0 0.0
  %422 = vmatpush1.msra.mxu0 0.0
  %423 = vmatprep.mubr.f32.mxu0 0.0
  %424 = vmatmul.mubr.f32.gmra.mrb[0].mxu0 %v357
  %v425 = vpop.f32.mrb[0].mxu0
  %v426 = vadd.f32 0.0, %v425
  %v427 = vpop.f32.mrb[0].mxu0
  %428 = vdwg.mxu0
  %v429 = vadd.f32 %v356, %v426
  %v430 = vxor.u32 %v429, 2147483648
  %v431 = vmul.f32 %v430, 1.442695
  %v432 = vpow.pop %v431
  %v433 = vadd.f32 %v432, 1.0
  %v434 = vrcp.pop %v433
  %v435 = vmul.f32 1.0, %v434
  %v436 = vtanh.pop %v429
  %v437 = vmul.f32 %v435, %v342
  %439 = vrot.lane.b32.xlu0 %v436, 64
  %v440 = vpop.permute.xlu0 %439
  %v442 = vmul.f32 %v435, %v440
  %444 = vrot.lane.b32.xlu0 %v442, 32
  %v445 = vpop.permute.xlu0 %444
  %v447 = vadd.f32 %v437, %v445
  %v448 = vtanh.pop %v447
  %450 = vrot.lane.b32.xlu0 %v448, 64
  %v451 = vpop.permute.xlu0 %450
  %v453 = vmul.f32 %v435, %v451
  %455 = vrot.lane.b32.xlu0 %v453, 32
  %v456 = vpop.permute.xlu0 %455
  %s458 = scalar_lea.vmem %s4, 6
  %459 = vst.msk [vmem:[%s458] sm:$0x3] %vm143, %v456
  %s460 = scalar_lea.vmem %s0, 8
  %v461 = vld [vmem:[%s460] sm:$0x3]
  %v462 = vsel %vm36, %v456, 0
  %464 = vmatprep.subr.mxu0 0.0
  %465 = vmatpush1.msra.mxu0 %v29
  %466 = vmatprep.subr.mxu0 0.0
  %467 = vmatpush1.msra.mxu0 %v30
  %468 = vmatprep.subr.mxu0 0.0
  %469 = vmatpush1.msra.mxu0 %v31
  %470 = vmatprep.subr.mxu0 0.0
  %471 = vmatpush1.msra.mxu0 %v32
  %472 = vmatprep.subr.mxu0 0.0
  %473 = vmatpush1.msra.mxu0 0.0
  %474 = vmatprep.subr.mxu0 0.0
  %475 = vmatpush1.msra.mxu0 0.0
  %476 = vmatprep.subr.mxu0 0.0
  %477 = vmatpush1.msra.mxu0 0.0
  %478 = vmatprep.subr.mxu0 0.0
  %479 = vmatpush1.msra.mxu0 0.0
  %480 = vmatprep.subr.mxu0 0.0
  %481 = vmatpush1.msra.mxu0 0.0
  %482 = vmatprep.subr.mxu0 0.0
  %483 = vmatpush1.msra.mxu0 0.0
  %484 = vmatprep.subr.mxu0 0.0
  %485 = vmatpush1.msra.mxu0 0.0
  %486 = vmatprep.subr.mxu0 0.0
  %487 = vmatpush1.msra.mxu0 0.0
  %488 = vmatprep.subr.mxu0 0.0
  %489 = vmatpush1.msra.mxu0 0.0
  %490 = vmatprep.subr.mxu0 0.0
  %491 = vmatpush1.msra.mxu0 0.0
  %492 = vmatprep.subr.mxu0 0.0
  %493 = vmatpush1.msra.mxu0 0.0
  %494 = vmatprep.subr.mxu0 0.0
  %495 = vmatpush1.msra.mxu0 0.0
  %496 = vmatprep.subr.mxu0 0.0
  %497 = vmatpush1.msra.mxu0 0.0
  %498 = vmatprep.subr.mxu0 0.0
  %499 = vmatpush1.msra.mxu0 0.0
  %500 = vmatprep.subr.mxu0 0.0
  %501 = vmatpush1.msra.mxu0 0.0
  %502 = vmatprep.subr.mxu0 0.0
  %503 = vmatpush1.msra.mxu0 0.0
  %504 = vmatprep.subr.mxu0 0.0
  %505 = vmatpush1.msra.mxu0 0.0
  %506 = vmatprep.subr.mxu0 0.0
  %507 = vmatpush1.msra.mxu0 0.0
  %508 = vmatprep.subr.mxu0 0.0
  %509 = vmatpush1.msra.mxu0 0.0
  %510 = vmatprep.subr.mxu0 0.0
  %511 = vmatpush1.msra.mxu0 0.0
  %512 = vmatprep.subr.mxu0 0.0
  %513 = vmatpush1.msra.mxu0 0.0
  %514 = vmatprep.subr.mxu0 0.0
  %515 = vmatpush1.msra.mxu0 0.0
  %516 = vmatprep.subr.mxu0 0.0
  %517 = vmatpush1.msra.mxu0 0.0
  %518 = vmatprep.subr.mxu0 0.0
  %519 = vmatpush1.msra.mxu0 0.0
  %520 = vmatprep.subr.mxu0 0.0
  %521 = vmatpush1.msra.mxu0 0.0
  %522 = vmatprep.subr.mxu0 0.0
  %523 = vmatpush1.msra.mxu0 0.0
  %524 = vmatprep.subr.mxu0 0.0
  %525 = vmatpush1.msra.mxu0 0.0
  %526 = vmatprep.subr.mxu0 0.0
  %527 = vmatpush1.msra.mxu0 0.0
  %528 = vmatprep.mubr.f32.mxu0 0.0
  %529 = vmatmul.mubr.f32.gmra.mrb[0].mxu0 %v462
  %v530 = vpop.f32.mrb[0].mxu0
  %v531 = vadd.f32 0.0, %v530
  %v532 = vpop.f32.mrb[0].mxu0
  %533 = vdwg.mxu0
  %v534 = vadd.f32 %v461, %v531
  %v535 = vxor.u32 %v534, 2147483648
  %v536 = vmul.f32 %v535, 1.442695
  %v537 = vpow.pop %v536
  %v538 = vadd.f32 %v537, 1.0
  %v539 = vrcp.pop %v538
  %v540 = vmul.f32 1.0, %v539
  %v541 = vtanh.pop %v534
  %v542 = vmul.f32 %v540, %v447
  %544 = vrot.lane.b32.xlu0 %v541, 64
  %v545 = vpop.permute.xlu0 %544
  %v547 = vmul.f32 %v540, %v545
  %549 = vrot.lane.b32.xlu0 %v547, 32
  %v550 = vpop.permute.xlu0 %549
  %v552 = vadd.f32 %v542, %v550
  %v553 = vtanh.pop %v552
  %555 = vrot.lane.b32.xlu0 %v553, 64
  %v556 = vpop.permute.xlu0 %555
  %v558 = vmul.f32 %v540, %v556
  %560 = vrot.lane.b32.xlu0 %v558, 32
  %v561 = vpop.permute.xlu0 %560
  %s563 = scalar_lea.vmem %s4, 8
  %564 = vst.msk [vmem:[%s563] sm:$0x3] %vm143, %v561
  %s565 = scalar_lea.vmem %s0, 10
  %v566 = vld [vmem:[%s565] sm:$0x3]
  %v567 = vsel %vm36, %v561, 0
  %569 = vmatprep.subr.mxu0 0.0
  %570 = vmatpush1.msra.mxu0 %v29
  %571 = vmatprep.subr.mxu0 0.0
  %572 = vmatpush1.msra.mxu0 %v30
  %573 = vmatprep.subr.mxu0 0.0
  %574 = vmatpush1.msra.mxu0 %v31
  %575 = vmatprep.subr.mxu0 0.0
  %576 = vmatpush1.msra.mxu0 %v32
  %577 = vmatprep.subr.mxu0 0.0
  %578 = vmatpush1.msra.mxu0 0.0
  %579 = vmatprep.subr.mxu0 0.0
  %580 = vmatpush1.msra.mxu0 0.0
  %581 = vmatprep.subr.mxu0 0.0
  %582 = vmatpush1.msra.mxu0 0.0
  %583 = vmatprep.subr.mxu0 0.0
  %584 = vmatpush1.msra.mxu0 0.0
  %585 = vmatprep.subr.mxu0 0.0
  %586 = vmatpush1.msra.mxu0 0.0
  %587 = vmatprep.subr.mxu0 0.0
  %588 = vmatpush1.msra.mxu0 0.0
  %589 = vmatprep.subr.mxu0 0.0
  %590 = vmatpush1.msra.mxu0 0.0
  %591 = vmatprep.subr.mxu0 0.0
  %592 = vmatpush1.msra.mxu0 0.0
  %593 = vmatprep.subr.mxu0 0.0
  %594 = vmatpush1.msra.mxu0 0.0
  %595 = vmatprep.subr.mxu0 0.0
  %596 = vmatpush1.msra.mxu0 0.0
  %597 = vmatprep.subr.mxu0 0.0
  %598 = vmatpush1.msra.mxu0 0.0
  %599 = vmatprep.subr.mxu0 0.0
  %600 = vmatpush1.msra.mxu0 0.0
  %601 = vmatprep.subr.mxu0 0.0
  %602 = vmatpush1.msra.mxu0 0.0
  %603 = vmatprep.subr.mxu0 0.0
  %604 = vmatpush1.msra.mxu0 0.0
  %605 = vmatprep.subr.mxu0 0.0
  %606 = vmatpush1.msra.mxu0 0.0
  %607 = vmatprep.subr.mxu0 0.0
  %608 = vmatpush1.msra.mxu0 0.0
  %609 = vmatprep.subr.mxu0 0.0
  %610 = vmatpush1.msra.mxu0 0.0
  %611 = vmatprep.subr.mxu0 0.0
  %612 = vmatpush1.msra.mxu0 0.0
  %613 = vmatprep.subr.mxu0 0.0
  %614 = vmatpush1.msra.mxu0 0.0
  %615 = vmatprep.subr.mxu0 0.0
  %616 = vmatpush1.msra.mxu0 0.0
  %617 = vmatprep.subr.mxu0 0.0
  %618 = vmatpush1.msra.mxu0 0.0
  %619 = vmatprep.subr.mxu0 0.0
  %620 = vmatpush1.msra.mxu0 0.0
  %621 = vmatprep.subr.mxu0 0.0
  %622 = vmatpush1.msra.mxu0 0.0
  %623 = vmatprep.subr.mxu0 0.0
  %624 = vmatpush1.msra.mxu0 0.0
  %625 = vmatprep.subr.mxu0 0.0
  %626 = vmatpush1.msra.mxu0 0.0
  %627 = vmatprep.subr.mxu0 0.0
  %628 = vmatpush1.msra.mxu0 0.0
  %629 = vmatprep.subr.mxu0 0.0
  %630 = vmatpush1.msra.mxu0 0.0
  %631 = vmatprep.subr.mxu0 0.0
  %632 = vmatpush1.msra.mxu0 0.0
  %633 = vmatprep.mubr.f32.mxu0 0.0
  %634 = vmatmul.mubr.f32.gmra.mrb[0].mxu0 %v567
  %v635 = vpop.f32.mrb[0].mxu0
  %v636 = vadd.f32 0.0, %v635
  %v637 = vpop.f32.mrb[0].mxu0
  %638 = vdwg.mxu0
  %v639 = vadd.f32 %v566, %v636
  %v640 = vxor.u32 %v639, 2147483648
  %v641 = vmul.f32 %v640, 1.442695
  %v642 = vpow.pop %v641
  %v643 = vadd.f32 %v642, 1.0
  %v644 = vrcp.pop %v643
  %v645 = vmul.f32 1.0, %v644
  %v646 = vtanh.pop %v639
  %v647 = vmul.f32 %v645, %v552
  %649 = vrot.lane.b32.xlu0 %v646, 64
  %v650 = vpop.permute.xlu0 %649
  %v652 = vmul.f32 %v645, %v650
  %654 = vrot.lane.b32.xlu0 %v652, 32
  %v655 = vpop.permute.xlu0 %654
  %v657 = vadd.f32 %v647, %v655
  %v658 = vtanh.pop %v657
  %660 = vrot.lane.b32.xlu0 %v658, 64
  %v661 = vpop.permute.xlu0 %660
  %v663 = vmul.f32 %v645, %v661
  %665 = vrot.lane.b32.xlu0 %v663, 32
  %v666 = vpop.permute.xlu0 %665
  %s668 = scalar_lea.vmem %s4, 10
  %669 = vst.msk [vmem:[%s668] sm:$0x3] %vm143, %v666
  %s670 = scalar_lea.vmem %s0, 12
  %v671 = vld [vmem:[%s670] sm:$0x3]
  %v672 = vsel %vm36, %v666, 0
  %674 = vmatprep.subr.mxu0 0.0
  %675 = vmatpush1.msra.mxu0 %v29
  %676 = vmatprep.subr.mxu0 0.0
  %677 = vmatpush1.msra.mxu0 %v30
  %678 = vmatprep.subr.mxu0 0.0
  %679 = vmatpush1.msra.mxu0 %v31
  %680 = vmatprep.subr.mxu0 0.0
  %681 = vmatpush1.msra.mxu0 %v32
  %682 = vmatprep.subr.mxu0 0.0
  %683 = vmatpush1.msra.mxu0 0.0
  %684 = vmatprep.subr.mxu0 0.0
  %685 = vmatpush1.msra.mxu0 0.0
  %686 = vmatprep.subr.mxu0 0.0
  %687 = vmatpush1.msra.mxu0 0.0
  %688 = vmatprep.subr.mxu0 0.0
  %689 = vmatpush1.msra.mxu0 0.0
  %690 = vmatprep.subr.mxu0 0.0
  %691 = vmatpush1.msra.mxu0 0.0
  %692 = vmatprep.subr.mxu0 0.0
  %693 = vmatpush1.msra.mxu0 0.0
  %694 = vmatprep.subr.mxu0 0.0
  %695 = vmatpush1.msra.mxu0 0.0
  %696 = vmatprep.subr.mxu0 0.0
  %697 = vmatpush1.msra.mxu0 0.0
  %698 = vmatprep.subr.mxu0 0.0
  %699 = vmatpush1.msra.mxu0 0.0
  %700 = vmatprep.subr.mxu0 0.0
  %701 = vmatpush1.msra.mxu0 0.0
  %702 = vmatprep.subr.mxu0 0.0
  %703 = vmatpush1.msra.mxu0 0.0
  %704 = vmatprep.subr.mxu0 0.0
  %705 = vmatpush1.msra.mxu0 0.0
  %706 = vmatprep.subr.mxu0 0.0
  %707 = vmatpush1.msra.mxu0 0.0
  %708 = vmatprep.subr.mxu0 0.0
  %709 = vmatpush1.msra.mxu0 0.0
  %710 = vmatprep.subr.mxu0 0.0
  %711 = vmatpush1.msra.mxu0 0.0
  %712 = vmatprep.subr.mxu0 0.0
  %713 = vmatpush1.msra.mxu0 0.0
  %714 = vmatprep.subr.mxu0 0.0
  %715 = vmatpush1.msra.mxu0 0.0
  %716 = vmatprep.subr.mxu0 0.0
  %717 = vmatpush1.msra.mxu0 0.0
  %718 = vmatprep.subr.mxu0 0.0
  %719 = vmatpush1.msra.mxu0 0.0
  %720 = vmatprep.subr.mxu0 0.0
  %721 = vmatpush1.msra.mxu0 0.0
  %722 = vmatprep.subr.mxu0 0.0
  %723 = vmatpush1.msra.mxu0 0.0
  %724 = vmatprep.subr.mxu0 0.0
  %725 = vmatpush1.msra.mxu0 0.0
  %726 = vmatprep.subr.mxu0 0.0
  %727 = vmatpush1.msra.mxu0 0.0
  %728 = vmatprep.subr.mxu0 0.0
  %729 = vmatpush1.msra.mxu0 0.0
  %730 = vmatprep.subr.mxu0 0.0
  %731 = vmatpush1.msra.mxu0 0.0
  %732 = vmatprep.subr.mxu0 0.0
  %733 = vmatpush1.msra.mxu0 0.0
  %734 = vmatprep.subr.mxu0 0.0
  %735 = vmatpush1.msra.mxu0 0.0
  %736 = vmatprep.subr.mxu0 0.0
  %737 = vmatpush1.msra.mxu0 0.0
  %738 = vmatprep.mubr.f32.mxu0 0.0
  %739 = vmatmul.mubr.f32.gmra.mrb[0].mxu0 %v672
  %v740 = vpop.f32.mrb[0].mxu0
  %v741 = vadd.f32 0.0, %v740
  %v742 = vpop.f32.mrb[0].mxu0
  %743 = vdwg.mxu0
  %v744 = vadd.f32 %v671, %v741
  %v745 = vxor.u32 %v744, 2147483648
  %v746 = vmul.f32 %v745, 1.442695
  %v747 = vpow.pop %v746
  %v748 = vadd.f32 %v747, 1.0
  %v749 = vrcp.pop %v748
  %v750 = vmul.f32 1.0, %v749
  %v751 = vtanh.pop %v744
  %v752 = vmul.f32 %v750, %v657
  %754 = vrot.lane.b32.xlu0 %v751, 64
  %v755 = vpop.permute.xlu0 %754
  %v757 = vmul.f32 %v750, %v755
  %759 = vrot.lane.b32.xlu0 %v757, 32
  %v760 = vpop.permute.xlu0 %759
  %v762 = vadd.f32 %v752, %v760
  %v763 = vtanh.pop %v762
  %765 = vrot.lane.b32.xlu0 %v763, 64
  %v766 = vpop.permute.xlu0 %765
  %v768 = vmul.f32 %v750, %v766
  %770 = vrot.lane.b32.xlu0 %v768, 32
  %v771 = vpop.permute.xlu0 %770
  %s773 = scalar_lea.vmem %s4, 12
  %774 = vst.msk [vmem:[%s773] sm:$0x3] %vm143, %v771
  %s775 = scalar_lea.vmem %s0, 14
  %v776 = vld [vmem:[%s775] sm:$0x3]
  %v777 = vsel %vm36, %v771, 0
  %779 = vmatprep.subr.mxu0 0.0
  %780 = vmatpush1.msra.mxu0 %v29
  %781 = vmatprep.subr.mxu0 0.0
  %782 = vmatpush1.msra.mxu0 %v30
  %783 = vmatprep.subr.mxu0 0.0
  %784 = vmatpush1.msra.mxu0 %v31
  %785 = vmatprep.subr.mxu0 0.0
  %786 = vmatpush1.msra.mxu0 %v32
  %787 = vmatprep.subr.mxu0 0.0
  %788 = vmatpush1.msra.mxu0 0.0
  %789 = vmatprep.subr.mxu0 0.0
  %790 = vmatpush1.msra.mxu0 0.0
  %791 = vmatprep.subr.mxu0 0.0
  %792 = vmatpush1.msra.mxu0 0.0
  %793 = vmatprep.subr.mxu0 0.0
  %794 = vmatpush1.msra.mxu0 0.0
  %795 = vmatprep.subr.mxu0 0.0
  %796 = vmatpush1.msra.mxu0 0.0
  %797 = vmatprep.subr.mxu0 0.0
  %798 = vmatpush1.msra.mxu0 0.0
  %799 = vmatprep.subr.mxu0 0.0
  %800 = vmatpush1.msra.mxu0 0.0
  %801 = vmatprep.subr.mxu0 0.0
  %802 = vmatpush1.msra.mxu0 0.0
  %803 = vmatprep.subr.mxu0 0.0
  %804 = vmatpush1.msra.mxu0 0.0
  %805 = vmatprep.subr.mxu0 0.0
  %806 = vmatpush1.msra.mxu0 0.0
  %807 = vmatprep.subr.mxu0 0.0
  %808 = vmatpush1.msra.mxu0 0.0
  %809 = vmatprep.subr.mxu0 0.0
  %810 = vmatpush1.msra.mxu0 0.0
  %811 = vmatprep.subr.mxu0 0.0
  %812 = vmatpush1.msra.mxu0 0.0
  %813 = vmatprep.subr.mxu0 0.0
  %814 = vmatpush1.msra.mxu0 0.0
  %815 = vmatprep.subr.mxu0 0.0
  %816 = vmatpush1.msra.mxu0 0.0
  %817 = vmatprep.subr.mxu0 0.0
  %818 = vmatpush1.msra.mxu0 0.0
  %819 = vmatprep.subr.mxu0 0.0
  %820 = vmatpush1.msra.mxu0 0.0
  %821 = vmatprep.subr.mxu0 0.0
  %822 = vmatpush1.msra.mxu0 0.0
  %823 = vmatprep.subr.mxu0 0.0
  %824 = vmatpush1.msra.mxu0 0.0
  %825 = vmatprep.subr.mxu0 0.0
  %826 = vmatpush1.msra.mxu0 0.0
  %827 = vmatprep.subr.mxu0 0.0
  %828 = vmatpush1.msra.mxu0 0.0
  %829 = vmatprep.subr.mxu0 0.0
  %830 = vmatpush1.msra.mxu0 0.0
  %831 = vmatprep.subr.mxu0 0.0
  %832 = vmatpush1.msra.mxu0 0.0
  %833 = vmatprep.subr.mxu0 0.0
  %834 = vmatpush1.msra.mxu0 0.0
  %835 = vmatprep.subr.mxu0 0.0
  %836 = vmatpush1.msra.mxu0 0.0
  %837 = vmatprep.subr.mxu0 0.0
  %838 = vmatpush1.msra.mxu0 0.0
  %839 = vmatprep.subr.mxu0 0.0
  %840 = vmatpush1.msra.mxu0 0.0
  %841 = vmatprep.subr.mxu0 0.0
  %842 = vmatpush1.msra.mxu0 0.0
  %843 = vmatprep.mubr.f32.mxu0 0.0
  %844 = vmatmul.mubr.f32.gmra.mrb[0].mxu0 %v777
  %v845 = vpop.f32.mrb[0].mxu0
  %v846 = vadd.f32 0.0, %v845
  %v847 = vpop.f32.mrb[0].mxu0
  %848 = vdwg.mxu0
  %v849 = vadd.f32 %v776, %v846
  %v850 = vxor.u32 %v849, 2147483648
  %v851 = vmul.f32 %v850, 1.442695
  %v852 = vpow.pop %v851
  %v853 = vadd.f32 %v852, 1.0
  %v854 = vrcp.pop %v853
  %v855 = vmul.f32 1.0, %v854
  %v856 = vtanh.pop %v849
  %v857 = vmul.f32 %v855, %v762
  %859 = vrot.lane.b32.xlu0 %v856, 64
  %v860 = vpop.permute.xlu0 %859
  %v862 = vmul.f32 %v855, %v860
  %864 = vrot.lane.b32.xlu0 %v862, 32
  %v865 = vpop.permute.xlu0 %864
  %v867 = vadd.f32 %v857, %v865
  %v868 = vtanh.pop %v867
  %870 = vrot.lane.b32.xlu0 %v868, 64
  %v871 = vpop.permute.xlu0 %870
  %v873 = vmul.f32 %v855, %v871
  %875 = vrot.lane.b32.xlu0 %v873, 32
  %v876 = vpop.permute.xlu0 %875
  %s878 = scalar_lea.vmem %s4, 14
  %879 = vst.msk [vmem:[%s878] sm:$0x3] %vm143, %v876
  %880 = vst.msk [vmem:[%s5] sm:$0x3] %vm143, %v876
  %882 = vrot.lane.b32.xlu0 %v867, 96
  %v883 = vpop.permute.xlu0 %882
  %885 = vst.msk [vmem:[%s6] sm:$0x3] %vm143, %v883
  // Predicated region
  $region22: #{lstm_model_forward.6} parent=0 // pred_check
    _
  $region23: #{lstm_model_forward.6} parent=0 // pred_check_branch
    %887 = sbr.rel (0) target = $region25
  $region24: #{lstm_model_forward.6} parent=0 // pred_region
    _
  $region25: #{lstm_model_forward.6} parent=0 // pred_fallthru
    _
  // Predicated region
  $region26: #{lstm_model_forward.6} parent=0 // pred_check
    _
  $region27: #{lstm_model_forward.6} parent=0 // pred_check_branch
    %889 = sbr.rel (0) target = $region29
  $region28: #{lstm_model_forward.6} parent=0 // pred_region
    _
  $region29: #{lstm_model_forward.6} parent=0 // pred_fallthru
    _
  // Predicated region
  $region30: #{lstm_model_forward.6} parent=0 // pred_check
    _
  $region31: #{lstm_model_forward.6} parent=0 // pred_check_branch
    %891 = sbr.rel (0) target = $region33
  $region32: #{lstm_model_forward.6} parent=0 // pred_region
    _
  $region33: #{lstm_model_forward.6} parent=0 // pred_fallthru
    _
  // Predicated region
  $region34: #{lstm_model_forward.6} parent=0 // pred_check
    _
  $region35: #{lstm_model_forward.6} parent=0 // pred_check_branch
    %893 = sbr.rel (0) target = $region37
  $region36: #{lstm_model_forward.6} parent=0 // pred_region
    _
  $region37: #{lstm_model_forward.6} parent=0 // pred_fallthru
    _
  // Predicated region
  $region38: #{lstm_model_forward.6} parent=0 // pred_check
    _
  $region39: #{lstm_model_forward.6} parent=0 // pred_check_branch
    %895 = sbr.rel (0) target = $region41
  $region40: #{lstm_model_forward.6} parent=0 // pred_region
    _
  $region41: #{lstm_model_forward.6} parent=0 // pred_fallthru
    _
  // Predicated region
  $region42: #{lstm_model_forward.6} parent=0 // pred_check
    _
  $region43: #{lstm_model_forward.6} parent=0 // pred_check_branch
    %897 = sbr.rel (0) target = $region45
  $region44: #{lstm_model_forward.6} parent=0 // pred_region
    _
  $region45: #{lstm_model_forward.6} parent=0 // pred_fallthru
    _

</llo_original>
